<compile_context>
chip_gen: v7x
topology: tpu7x:2x2x1
jax: 0.10.0
libtpu: 0.0.40
codegen_flags: <defaults>
</compile_context>

<pallas_src>
import functools

import jax
import jax.numpy as jnp
from jax.experimental import pallas as pl
from jax.experimental.pallas import tpu as pltpu


# ----------------------------------------------------------------------------
# Fused kernel
#   x_ref        : (M, Cin)        flattened batch-tile of the input (M = bt*L)
#   notf/notl    : (M, 1)          halo masks (kill wrap across batch boundary)
#   pool_ref     : (bt, M)         per-batch-element mean-pool matrix (1/L)
#   wN_ref       : (3, CinN, CoutN) conv taps with BN scale folded in
#   shN_ref      : (1, CoutN)      folded conv-bias + BN shift
#   fc1w/fc1b    : (256,128)/(1,128)
#   fc2w/fc2b    : (128,NCp)/(1,NCp)   NCp = lane-dense (128-multiple) width
#   o_ref        : (bt, NCp)
# ----------------------------------------------------------------------------
def _net1d_fused_kernel(x_ref, notf_ref, notl_ref, pool_ref,
                        w1_ref, sh1_ref,
                        w2_ref, sh2_ref,
                        w3_ref, sh3_ref,
                        fc1w_ref, fc1b_ref, fc2w_ref, fc2b_ref,
                        o_ref, *, M):
    not_first = notf_ref[...]     # zeroes x[t-1] at t == 0 of each batch elem
    not_last = notl_ref[...]      # zeroes x[t+1] at t == L-1 of each batch elem

    def conv_bn_relu(h, w_ref, sh_ref):
        # Halo rows via XLU roll (separate bundle slot) + VPU mask; no copies.
        h_prev = pltpu.roll(h, shift=1, axis=0) * not_first
        h_next = pltpu.roll(h, shift=M - 1, axis=0) * not_last
        y = (jnp.dot(h_prev, w_ref[0], preferred_element_type=jnp.float32)
             + jnp.dot(h, w_ref[1], preferred_element_type=jnp.float32)
             + jnp.dot(h_next, w_ref[2], preferred_element_type=jnp.float32))
        return jnp.maximum(y + sh_ref[...], 0.0)   # BN scale already in weights

    h = conv_bn_relu(x_ref[...], w1_ref, sh1_ref)   # (M, 64)
    h = conv_bn_relu(h, w2_ref, sh2_ref)            # (M, 128)
    h = conv_bn_relu(h, w3_ref, sh3_ref)            # (M, 256)

    # Mean over length per batch element, as one small MXU matmul.
    pooled = jnp.dot(pool_ref[...], h, preferred_element_type=jnp.float32)  # (bt,256)

    # TODO(synk): nn.Dropout(p=0.5) is identity in inference mode.
    z = jnp.maximum(
        jnp.dot(pooled, fc1w_ref[...],
                preferred_element_type=jnp.float32) + fc1b_ref[...], 0.0)
    out = jnp.dot(z, fc2w_ref[...],
                  preferred_element_type=jnp.float32) + fc2b_ref[...]
    o_ref[...] = out.astype(o_ref.dtype)


def _replicated_spec(shape):
    nd = len(shape)
    return pl.BlockSpec(shape, lambda *_: (0,) * nd)


def _choose_block_batch(B, L, target_rows=2048):
    """Pick bt (batch tile) s.t. bt | B and the (8,128) sublane rule holds."""
    bt = max(1, min(B, target_rows // max(L, 1)))
    while bt > 1 and (B % bt != 0 or (bt != B and bt % 8 != 0)):
        bt -= 1
    if B % bt != 0 or (bt != B and bt % 8 != 0):
        bt = B
    return bt


def fused_net1d(x_blc, w1, sh1, w2, sh2, w3, sh3,
                fc1w, fc1b, fc2w, fc2b, *, block_batch=None):
    """x_blc: (B, L, Cin) -> (B, NCp) padded logits."""
    B, L, Cin = x_blc.shape
    bt = block_batch if block_batch is not None else _choose_block_batch(B, L)
    assert B % bt == 0, (B, bt)
    nb = B // bt
    M = bt * L
    ncp = fc2w.shape[-1]

    x_flat = x_blc.reshape(B * L, Cin)            # row-major contiguous, free

    # Constant helper tensors built once (outside the grid loop).
    row = jnp.arange(M, dtype=jnp.int32).reshape(M, 1)
    not_first = ((row % L) != 0).astype(jnp.float32)
    not_last = ((row % L) != (L - 1)).astype(jnp.float32)
    b_idx = jnp.arange(bt, dtype=jnp.int32).reshape(bt, 1)
    r_idx = jnp.arange(M, dtype=jnp.int32).reshape(1, M)
    pool = jnp.where((r_idx >= b_idx * L) & (r_idx < (b_idx + 1) * L),
                     jnp.float32(1.0 / L), jnp.float32(0.0))      # (bt, M)

    consts = (not_first, not_last, pool,
              w1, sh1, w2, sh2, w3, sh3, fc1w, fc1b, fc2w, fc2b)
    in_specs = [pl.BlockSpec((M, Cin), lambda i: (i, 0))]
    in_specs += [_replicated_spec(a.shape) for a in consts]

    kernel = functools.partial(_net1d_fused_kernel, M=M)
    return pl.pallas_call(
        kernel,
        out_shape=jax.ShapeDtypeStruct((B, ncp), jnp.float32),
        grid_spec=pltpu.PrefetchScalarGridSpec(
            num_scalar_prefetch=0,
            grid=(nb,),
            in_specs=in_specs,
            out_specs=pl.BlockSpec((bt, ncp), lambda i: (i, 0)),
        ),
        compiler_params=pltpu.CompilerParams(
            dimension_semantics=("parallel",)),
    )(x_flat, *consts)


# ----------------------------------------------------------------------------
# Parameter construction, folding, forward, reference
# ----------------------------------------------------------------------------
def fold_bn_into_conv(w, b, gamma, beta, mean, var, eps=1e-5):
    """Return (w_folded, shift) s.t. bn(conv(x)) == x @ w_folded[k] + shift."""
    inv = gamma / jnp.sqrt(var + eps)              # (Cout,)
    w_folded = w * inv[None, None, :]              # fold BN scale into weights
    shift = (b - mean) * inv + beta
    return w_folded, shift.reshape(1, -1)


def make_params(key, in_channels, num_classes):
    ks = jax.random.split(key, 22)
    p = {}

    def conv_layer(i, cin, cout, k0):
        # conv weight stored as (3, Cin, Cout)  (PyTorch weight is (Cout,Cin,3))
        p[f"conv{i}_w"] = 0.1 * jax.random.normal(ks[k0], (3, cin, cout), jnp.float32)
        p[f"conv{i}_b"] = 0.05 * jax.random.normal(ks[k0 + 1], (cout,), jnp.float32)
        p[f"bn{i}_gamma"] = 1.0 + 0.1 * jax.random.normal(ks[k0 + 2], (cout,), jnp.float32)
        p[f"bn{i}_beta"] = 0.05 * jax.random.normal(ks[k0 + 3], (cout,), jnp.float32)
        p[f"bn{i}_mean"] = 0.01 * jax.random.normal(ks[k0 + 4], (cout,), jnp.float32)
        p[f"bn{i}_var"] = 1.0 + 0.1 * jax.random.uniform(ks[k0 + 5], (cout,), jnp.float32)

    conv_layer(1, in_channels, 64, 0)
    conv_layer(2, 64, 128, 6)
    conv_layer(3, 128, 256, 12)

    p["fc1_w"] = 0.05 * jax.random.normal(ks[18], (256, 128), jnp.float32)
    p["fc1_b"] = 0.05 * jax.random.normal(ks[19], (1, 128), jnp.float32)
    p["fc2_w"] = 0.05 * jax.random.normal(ks[20], (128, num_classes), jnp.float32)
    p["fc2_b"] = 0.05 * jax.random.normal(ks[21], (1, num_classes), jnp.float32)
    return p


@jax.jit
def net1d_forward(x_ncl, params):
    """x_ncl: (B, Cin, L)  (PyTorch NCL layout) -> logits (B, num_classes)."""
    nc = params["fc2_w"].shape[-1]
    ncp = max(128, -(-nc // 128) * 128)             # lane-dense output width
    fc2_w = jnp.pad(params["fc2_w"], ((0, 0), (0, ncp - nc)))
    fc2_b = jnp.pad(params["fc2_b"], ((0, 0), (0, ncp - nc)))

    folded = []
    for i in (1, 2, 3):
        w_f, sh = fold_bn_into_conv(
            params[f"conv{i}_w"], params[f"conv{i}_b"],
            params[f"bn{i}_gamma"], params[f"bn{i}_beta"],
            params[f"bn{i}_mean"], params[f"bn{i}_var"])
        folded += [w_f, sh]

    x = jnp.transpose(x_ncl, (0, 2, 1)).astype(jnp.float32)   # -> (B, L, Cin)
    out = fused_net1d(x, *folded,
                      params["fc1_w"], params["fc1_b"], fc2_w, fc2_b)
    return out[:, :nc]                               # slice padding back off


# Pure-JAX reference (unfolded conv + BN, matches PyTorch eval semantics) -----
def reference_forward(x_ncl, params, eps=1e-5):
    x = jnp.transpose(x_ncl, (0, 2, 1)).astype(jnp.float32)   # (B, L, Cin)

    def conv_bn_relu(x, w, b, gamma, beta, mean, var):
        B, L, Cin = x.shape
        xp = jnp.pad(x, ((0, 0), (1, 1), (0, 0)))
        y = sum(jnp.einsum("blc,cd->bld", xp[:, k:k + L, :], w[k])
                for k in range(3)) + b
        y = (y - mean) / jnp.sqrt(var + eps) * gamma + beta
        return jnp.maximum(y, 0.0)

    for i in (1, 2, 3):
        x = conv_bn_relu(x, params[f"conv{i}_w"], params[f"conv{i}_b"],
                         params[f"bn{i}_gamma"], params[f"bn{i}_beta"],
                         params[f"bn{i}_mean"], params[f"bn{i}_var"])
    pooled = jnp.mean(x, axis=1)
    h = jnp.maximum(pooled @ params["fc1_w"] + params["fc1_b"], 0.0)
    return h @ params["fc2_w"] + params["fc2_b"]


if __name__ == "__main__":
    B, IN_CH, L, NUM_CLASSES = 2, 4, 16, 5

    key = jax.random.PRNGKey(0)
    kx, kp = jax.random.split(key)
    x = jax.random.normal(kx, (B, IN_CH, L), jnp.float32)   # PyTorch NCL input
    params = make_params(kp, IN_CH, NUM_CLASSES)

    out = jax.block_until_ready(net1d_forward(x, params))
    ref = reference_forward(x, params)

    assert out.shape == (B, NUM_CLASSES), out.shape
    assert jnp.allclose(out, ref, atol=1e-4, rtol=1e-4), (out, ref)

    print("KERNEL_OK")
</pallas_src>

<mosaic_0001>
module attributes {stable_mosaic.version = 11 : i64} {
  func.func @_net1d_fused_kernel(%arg0: i32, %arg1: memref<32x4xf32, #tpu.memory_space<vmem>>, %arg2: memref<32x1xf32, #tpu.memory_space<vmem>>, %arg3: memref<32x1xf32, #tpu.memory_space<vmem>>, %arg4: memref<2x32xf32, #tpu.memory_space<vmem>>, %arg5: memref<3x4x64xf32, #tpu.memory_space<vmem>>, %arg6: memref<1x64xf32, #tpu.memory_space<vmem>>, %arg7: memref<3x64x128xf32, #tpu.memory_space<vmem>>, %arg8: memref<1x128xf32, #tpu.memory_space<vmem>>, %arg9: memref<3x128x256xf32, #tpu.memory_space<vmem>>, %arg10: memref<1x256xf32, #tpu.memory_space<vmem>>, %arg11: memref<256x128xf32, #tpu.memory_space<vmem>>, %arg12: memref<1x128xf32, #tpu.memory_space<vmem>>, %arg13: memref<128x128xf32, #tpu.memory_space<vmem>>, %arg14: memref<1x128xf32, #tpu.memory_space<vmem>>, %arg15: memref<2x128xf32, #tpu.memory_space<vmem>>) attributes {dimension_semantics = [#tpu.dimension_semantics<parallel>], iteration_bounds = array<i64: 1>, scalar_prefetch = 0 : i64, scratch_operands = 0 : i64, tpu.core_type = #tpu.core_type<tc>, window_params = [{transform_indices = @transform_0, window_bounds = array<i64: 32, 4>}, {pipeline_mode = #tpu.pipeline_mode<synchronous>, transform_indices = @transform_1, window_bounds = array<i64: 32, 1>}, {pipeline_mode = #tpu.pipeline_mode<synchronous>, transform_indices = @transform_2, window_bounds = array<i64: 32, 1>}, {pipeline_mode = #tpu.pipeline_mode<synchronous>, transform_indices = @transform_3, window_bounds = array<i64: 2, 32>}, {pipeline_mode = #tpu.pipeline_mode<synchronous>, transform_indices = @transform_4, window_bounds = array<i64: 3, 4, 64>}, {pipeline_mode = #tpu.pipeline_mode<synchronous>, transform_indices = @transform_5, window_bounds = array<i64: 1, 64>}, {pipeline_mode = #tpu.pipeline_mode<synchronous>, transform_indices = @transform_6, window_bounds = array<i64: 3, 64, 128>}, {pipeline_mode = #tpu.pipeline_mode<synchronous>, transform_indices = @transform_7, window_bounds = array<i64: 1, 128>}, {pipeline_mode = #tpu.pipeline_mode<synchronous>, transform_indices = @transform_8, window_bounds = array<i64: 3, 128, 256>}, {pipeline_mode = #tpu.pipeline_mode<synchronous>, transform_indices = @transform_9, window_bounds = array<i64: 1, 256>}, {pipeline_mode = #tpu.pipeline_mode<synchronous>, transform_indices = @transform_10, window_bounds = array<i64: 256, 128>}, {pipeline_mode = #tpu.pipeline_mode<synchronous>, transform_indices = @transform_11, window_bounds = array<i64: 1, 128>}, {pipeline_mode = #tpu.pipeline_mode<synchronous>, transform_indices = @transform_12, window_bounds = array<i64: 128, 128>}, {pipeline_mode = #tpu.pipeline_mode<synchronous>, transform_indices = @transform_13, window_bounds = array<i64: 1, 128>}, {transform_indices = @transform_14, window_bounds = array<i64: 2, 128>}]} {
    %c0 = arith.constant 0 : index
    %c0_0 = arith.constant 0 : index
    %0 = vector.load %arg2[%c0, %c0_0] : memref<32x1xf32, #tpu.memory_space<vmem>>, vector<32x1xf32>
    %c0_1 = arith.constant 0 : index
    %c0_2 = arith.constant 0 : index
    %1 = vector.load %arg3[%c0_1, %c0_2] : memref<32x1xf32, #tpu.memory_space<vmem>>, vector<32x1xf32>
    %c0_3 = arith.constant 0 : index
    %c0_4 = arith.constant 0 : index
    %2 = vector.load %arg1[%c0_3, %c0_4] : memref<32x4xf32, #tpu.memory_space<vmem>>, vector<32x4xf32>
    %c1_i32 = arith.constant 1 : i32
    %3 = tpu.dynamic_rotate %2 by %c1_i32 dim 0 : vector<32x4xf32>, i32 -> vector<32x4xf32>
    %4 = vector.broadcast %0 : vector<32x1xf32> to vector<32x4xf32>
    %5 = arith.mulf %3, %4 : vector<32x4xf32>
    %c31_i32 = arith.constant 31 : i32
    %6 = tpu.dynamic_rotate %2 by %c31_i32 dim 0 : vector<32x4xf32>, i32 -> vector<32x4xf32>
    %7 = vector.broadcast %1 : vector<32x1xf32> to vector<32x4xf32>
    %8 = arith.mulf %6, %7 : vector<32x4xf32>
    %c0_5 = arith.constant 0 : index
    %c0_6 = arith.constant 0 : index
    %c0_7 = arith.constant 0 : index
    %9 = vector.load %arg5[%c0_5, %c0_6, %c0_7] : memref<3x4x64xf32, #tpu.memory_space<vmem>>, vector<1x4x64xf32>
    %10 = vector.shape_cast %9 : vector<1x4x64xf32> to vector<4x64xf32>
    %cst = arith.constant dense<0.000000e+00> : vector<32x64xf32>
    %11 = tpu.matmul %5, %10, %cst {dimension_numbers = #tpu.dot_dimension_numbers<[1], [0], [0], [1], [0, 0, 1, 1], [], []>} : vector<32x4xf32>, vector<4x64xf32>, vector<32x64xf32> -> vector<32x64xf32>
    %c1 = arith.constant 1 : index
    %c0_8 = arith.constant 0 : index
    %c0_9 = arith.constant 0 : index
    %12 = vector.load %arg5[%c1, %c0_8, %c0_9] : memref<3x4x64xf32, #tpu.memory_space<vmem>>, vector<1x4x64xf32>
    %13 = vector.shape_cast %12 : vector<1x4x64xf32> to vector<4x64xf32>
    %cst_10 = arith.constant dense<0.000000e+00> : vector<32x64xf32>
    %14 = tpu.matmul %2, %13, %cst_10 {dimension_numbers = #tpu.dot_dimension_numbers<[1], [0], [0], [1], [0, 0, 1, 1], [], []>} : vector<32x4xf32>, vector<4x64xf32>, vector<32x64xf32> -> vector<32x64xf32>
    %15 = arith.addf %11, %14 : vector<32x64xf32>
    %c2 = arith.constant 2 : index
    %c0_11 = arith.constant 0 : index
    %c0_12 = arith.constant 0 : index
    %16 = vector.load %arg5[%c2, %c0_11, %c0_12] : memref<3x4x64xf32, #tpu.memory_space<vmem>>, vector<1x4x64xf32>
    %17 = vector.shape_cast %16 : vector<1x4x64xf32> to vector<4x64xf32>
    %cst_13 = arith.constant dense<0.000000e+00> : vector<32x64xf32>
    %18 = tpu.matmul %8, %17, %cst_13 {dimension_numbers = #tpu.dot_dimension_numbers<[1], [0], [0], [1], [0, 0, 1, 1], [], []>} : vector<32x4xf32>, vector<4x64xf32>, vector<32x64xf32> -> vector<32x64xf32>
    %19 = arith.addf %15, %18 : vector<32x64xf32>
    %c0_14 = arith.constant 0 : index
    %c0_15 = arith.constant 0 : index
    %20 = vector.load %arg6[%c0_14, %c0_15] : memref<1x64xf32, #tpu.memory_space<vmem>>, vector<1x64xf32>
    %21 = vector.broadcast %20 : vector<1x64xf32> to vector<32x64xf32>
    %22 = arith.addf %19, %21 : vector<32x64xf32>
    %cst_16 = arith.constant 0.000000e+00 : f32
    %23 = vector.broadcast %cst_16 : f32 to vector<32x64xf32>
    %24 = arith.maximumf %22, %23 : vector<32x64xf32>
    %c1_i32_17 = arith.constant 1 : i32
    %25 = tpu.dynamic_rotate %24 by %c1_i32_17 dim 0 : vector<32x64xf32>, i32 -> vector<32x64xf32>
    %26 = vector.broadcast %0 : vector<32x1xf32> to vector<32x64xf32>
    %27 = arith.mulf %25, %26 : vector<32x64xf32>
    %c31_i32_18 = arith.constant 31 : i32
    %28 = tpu.dynamic_rotate %24 by %c31_i32_18 dim 0 : vector<32x64xf32>, i32 -> vector<32x64xf32>
    %29 = vector.broadcast %1 : vector<32x1xf32> to vector<32x64xf32>
    %30 = arith.mulf %28, %29 : vector<32x64xf32>
    %c0_19 = arith.constant 0 : index
    %c0_20 = arith.constant 0 : index
    %c0_21 = arith.constant 0 : index
    %31 = vector.load %arg7[%c0_19, %c0_20, %c0_21] : memref<3x64x128xf32, #tpu.memory_space<vmem>>, vector<1x64x128xf32>
    %32 = vector.shape_cast %31 : vector<1x64x128xf32> to vector<64x128xf32>
    %cst_22 = arith.constant dense<0.000000e+00> : vector<32x128xf32>
    %33 = tpu.matmul %27, %32, %cst_22 {dimension_numbers = #tpu.dot_dimension_numbers<[1], [0], [0], [1], [0, 0, 1, 1], [], []>} : vector<32x64xf32>, vector<64x128xf32>, vector<32x128xf32> -> vector<32x128xf32>
    %c1_23 = arith.constant 1 : index
    %c0_24 = arith.constant 0 : index
    %c0_25 = arith.constant 0 : index
    %34 = vector.load %arg7[%c1_23, %c0_24, %c0_25] : memref<3x64x128xf32, #tpu.memory_space<vmem>>, vector<1x64x128xf32>
    %35 = vector.shape_cast %34 : vector<1x64x128xf32> to vector<64x128xf32>
    %cst_26 = arith.constant dense<0.000000e+00> : vector<32x128xf32>
    %36 = tpu.matmul %24, %35, %cst_26 {dimension_numbers = #tpu.dot_dimension_numbers<[1], [0], [0], [1], [0, 0, 1, 1], [], []>} : vector<32x64xf32>, vector<64x128xf32>, vector<32x128xf32> -> vector<32x128xf32>
    %37 = arith.addf %33, %36 : vector<32x128xf32>
    %c2_27 = arith.constant 2 : index
    %c0_28 = arith.constant 0 : index
    %c0_29 = arith.constant 0 : index
    %38 = vector.load %arg7[%c2_27, %c0_28, %c0_29] : memref<3x64x128xf32, #tpu.memory_space<vmem>>, vector<1x64x128xf32>
    %39 = vector.shape_cast %38 : vector<1x64x128xf32> to vector<64x128xf32>
    %cst_30 = arith.constant dense<0.000000e+00> : vector<32x128xf32>
    %40 = tpu.matmul %30, %39, %cst_30 {dimension_numbers = #tpu.dot_dimension_numbers<[1], [0], [0], [1], [0, 0, 1, 1], [], []>} : vector<32x64xf32>, vector<64x128xf32>, vector<32x128xf32> -> vector<32x128xf32>
    %41 = arith.addf %37, %40 : vector<32x128xf32>
    %c0_31 = arith.constant 0 : index
    %c0_32 = arith.constant 0 : index
    %42 = vector.load %arg8[%c0_31, %c0_32] : memref<1x128xf32, #tpu.memory_space<vmem>>, vector<1x128xf32>
    %43 = vector.broadcast %42 : vector<1x128xf32> to vector<32x128xf32>
    %44 = arith.addf %41, %43 : vector<32x128xf32>
    %cst_33 = arith.constant 0.000000e+00 : f32
    %45 = vector.broadcast %cst_33 : f32 to vector<32x128xf32>
    %46 = arith.maximumf %44, %45 : vector<32x128xf32>
    %c1_i32_34 = arith.constant 1 : i32
    %47 = tpu.dynamic_rotate %46 by %c1_i32_34 dim 0 : vector<32x128xf32>, i32 -> vector<32x128xf32>
    %48 = vector.broadcast %0 : vector<32x1xf32> to vector<32x128xf32>
    %49 = arith.mulf %47, %48 : vector<32x128xf32>
    %c31_i32_35 = arith.constant 31 : i32
    %50 = tpu.dynamic_rotate %46 by %c31_i32_35 dim 0 : vector<32x128xf32>, i32 -> vector<32x128xf32>
    %51 = vector.broadcast %1 : vector<32x1xf32> to vector<32x128xf32>
    %52 = arith.mulf %50, %51 : vector<32x128xf32>
    %c0_36 = arith.constant 0 : index
    %c0_37 = arith.constant 0 : index
    %c0_38 = arith.constant 0 : index
    %53 = vector.load %arg9[%c0_36, %c0_37, %c0_38] : memref<3x128x256xf32, #tpu.memory_space<vmem>>, vector<1x128x256xf32>
    %54 = vector.shape_cast %53 : vector<1x128x256xf32> to vector<128x256xf32>
    %cst_39 = arith.constant dense<0.000000e+00> : vector<32x256xf32>
    %55 = tpu.matmul %49, %54, %cst_39 {dimension_numbers = #tpu.dot_dimension_numbers<[1], [0], [0], [1], [0, 0, 1, 1], [], []>} : vector<32x128xf32>, vector<128x256xf32>, vector<32x256xf32> -> vector<32x256xf32>
    %c1_40 = arith.constant 1 : index
    %c0_41 = arith.constant 0 : index
    %c0_42 = arith.constant 0 : index
    %56 = vector.load %arg9[%c1_40, %c0_41, %c0_42] : memref<3x128x256xf32, #tpu.memory_space<vmem>>, vector<1x128x256xf32>
    %57 = vector.shape_cast %56 : vector<1x128x256xf32> to vector<128x256xf32>
    %cst_43 = arith.constant dense<0.000000e+00> : vector<32x256xf32>
    %58 = tpu.matmul %46, %57, %cst_43 {dimension_numbers = #tpu.dot_dimension_numbers<[1], [0], [0], [1], [0, 0, 1, 1], [], []>} : vector<32x128xf32>, vector<128x256xf32>, vector<32x256xf32> -> vector<32x256xf32>
    %59 = arith.addf %55, %58 : vector<32x256xf32>
    %c2_44 = arith.constant 2 : index
    %c0_45 = arith.constant 0 : index
    %c0_46 = arith.constant 0 : index
    %60 = vector.load %arg9[%c2_44, %c0_45, %c0_46] : memref<3x128x256xf32, #tpu.memory_space<vmem>>, vector<1x128x256xf32>
    %61 = vector.shape_cast %60 : vector<1x128x256xf32> to vector<128x256xf32>
    %cst_47 = arith.constant dense<0.000000e+00> : vector<32x256xf32>
    %62 = tpu.matmul %52, %61, %cst_47 {dimension_numbers = #tpu.dot_dimension_numbers<[1], [0], [0], [1], [0, 0, 1, 1], [], []>} : vector<32x128xf32>, vector<128x256xf32>, vector<32x256xf32> -> vector<32x256xf32>
    %63 = arith.addf %59, %62 : vector<32x256xf32>
    %c0_48 = arith.constant 0 : index
    %c0_49 = arith.constant 0 : index
    %64 = vector.load %arg10[%c0_48, %c0_49] : memref<1x256xf32, #tpu.memory_space<vmem>>, vector<1x256xf32>
    %65 = vector.broadcast %64 : vector<1x256xf32> to vector<32x256xf32>
    %66 = arith.addf %63, %65 : vector<32x256xf32>
    %cst_50 = arith.constant 0.000000e+00 : f32
    %67 = vector.broadcast %cst_50 : f32 to vector<32x256xf32>
    %68 = arith.maximumf %66, %67 : vector<32x256xf32>
    %c0_51 = arith.constant 0 : index
    %c0_52 = arith.constant 0 : index
    %69 = vector.load %arg4[%c0_51, %c0_52] : memref<2x32xf32, #tpu.memory_space<vmem>>, vector<2x32xf32>
    %cst_53 = arith.constant dense<0.000000e+00> : vector<2x256xf32>
    %70 = tpu.matmul %69, %68, %cst_53 {dimension_numbers = #tpu.dot_dimension_numbers<[1], [0], [0], [1], [0, 0, 1, 1], [], []>} : vector<2x32xf32>, vector<32x256xf32>, vector<2x256xf32> -> vector<2x256xf32>
    %c0_54 = arith.constant 0 : index
    %c0_55 = arith.constant 0 : index
    %71 = vector.load %arg11[%c0_54, %c0_55] : memref<256x128xf32, #tpu.memory_space<vmem>>, vector<256x128xf32>
    %cst_56 = arith.constant dense<0.000000e+00> : vector<2x128xf32>
    %72 = tpu.matmul %70, %71, %cst_56 {dimension_numbers = #tpu.dot_dimension_numbers<[1], [0], [0], [1], [0, 0, 1, 1], [], []>} : vector<2x256xf32>, vector<256x128xf32>, vector<2x128xf32> -> vector<2x128xf32>
    %c0_57 = arith.constant 0 : index
    %c0_58 = arith.constant 0 : index
    %73 = vector.load %arg12[%c0_57, %c0_58] : memref<1x128xf32, #tpu.memory_space<vmem>>, vector<1x128xf32>
    %74 = vector.broadcast %73 : vector<1x128xf32> to vector<2x128xf32>
    %75 = arith.addf %72, %74 : vector<2x128xf32>
    %cst_59 = arith.constant 0.000000e+00 : f32
    %76 = vector.broadcast %cst_59 : f32 to vector<2x128xf32>
    %77 = arith.maximumf %75, %76 : vector<2x128xf32>
    %c0_60 = arith.constant 0 : index
    %c0_61 = arith.constant 0 : index
    %78 = vector.load %arg13[%c0_60, %c0_61] : memref<128x128xf32, #tpu.memory_space<vmem>>, vector<128x128xf32>
    %cst_62 = arith.constant dense<0.000000e+00> : vector<2x128xf32>
    %79 = tpu.matmul %77, %78, %cst_62 {dimension_numbers = #tpu.dot_dimension_numbers<[1], [0], [0], [1], [0, 0, 1, 1], [], []>} : vector<2x128xf32>, vector<128x128xf32>, vector<2x128xf32> -> vector<2x128xf32>
    %c0_63 = arith.constant 0 : index
    %c0_64 = arith.constant 0 : index
    %80 = vector.load %arg14[%c0_63, %c0_64] : memref<1x128xf32, #tpu.memory_space<vmem>>, vector<1x128xf32>
    %81 = vector.broadcast %80 : vector<1x128xf32> to vector<2x128xf32>
    %82 = arith.addf %79, %81 : vector<2x128xf32>
    %c0_65 = arith.constant 0 : index
    %c0_66 = arith.constant 0 : index
    %83 = vector.load %arg15[%c0_65, %c0_66] : memref<2x128xf32, #tpu.memory_space<vmem>>, vector<2x128xf32>
    tpu.vector_store %arg15[%c0_65, %c0_66], %82 {strides = array<i32>} : memref<2x128xf32, #tpu.memory_space<vmem>>, vector<2x128xf32>,
    return
  }
  func.func @transform_0(%arg0: i32) -> (i32, i32) {
    %c0_i32 = arith.constant 0 : i32
    %c0_i32_0 = arith.constant 0 : i32
    return %arg0, %c0_i32 : i32, i32
  }
  func.func @transform_1(%arg0: i32) -> (i32, i32) {
    %c0_i32 = arith.constant 0 : i32
    %c0_i32_0 = arith.constant 0 : i32
    %c0_i32_1 = arith.constant 0 : i32
    return %c0_i32, %c0_i32_0 : i32, i32
  }
  func.func @transform_2(%arg0: i32) -> (i32, i32) {
    %c0_i32 = arith.constant 0 : i32
    %c0_i32_0 = arith.constant 0 : i32
    %c0_i32_1 = arith.constant 0 : i32
    return %c0_i32, %c0_i32_0 : i32, i32
  }
  func.func @transform_3(%arg0: i32) -> (i32, i32) {
    %c0_i32 = arith.constant 0 : i32
    %c0_i32_0 = arith.constant 0 : i32
    %c0_i32_1 = arith.constant 0 : i32
    return %c0_i32, %c0_i32_0 : i32, i32
  }
  func.func @transform_4(%arg0: i32) -> (i32, i32, i32) {
    %c0_i32 = arith.constant 0 : i32
    %c0_i32_0 = arith.constant 0 : i32
    %c0_i32_1 = arith.constant 0 : i32
    %c0_i32_2 = arith.constant 0 : i32
    return %c0_i32, %c0_i32_0, %c0_i32_1 : i32, i32, i32
  }
  func.func @transform_5(%arg0: i32) -> (i32, i32) {
    %c0_i32 = arith.constant 0 : i32
    %c0_i32_0 = arith.constant 0 : i32
    %c0_i32_1 = arith.constant 0 : i32
    return %c0_i32, %c0_i32_0 : i32, i32
  }
  func.func @transform_6(%arg0: i32) -> (i32, i32, i32) {
    %c0_i32 = arith.constant 0 : i32
    %c0_i32_0 = arith.constant 0 : i32
    %c0_i32_1 = arith.constant 0 : i32
    %c0_i32_2 = arith.constant 0 : i32
    return %c0_i32, %c0_i32_0, %c0_i32_1 : i32, i32, i32
  }
  func.func @transform_7(%arg0: i32) -> (i32, i32) {
    %c0_i32 = arith.constant 0 : i32
    %c0_i32_0 = arith.constant 0 : i32
    %c0_i32_1 = arith.constant 0 : i32
    return %c0_i32, %c0_i32_0 : i32, i32
  }
  func.func @transform_8(%arg0: i32) -> (i32, i32, i32) {
    %c0_i32 = arith.constant 0 : i32
    %c0_i32_0 = arith.constant 0 : i32
    %c0_i32_1 = arith.constant 0 : i32
    %c0_i32_2 = arith.constant 0 : i32
    return %c0_i32, %c0_i32_0, %c0_i32_1 : i32, i32, i32
  }
  func.func @transform_9(%arg0: i32) -> (i32, i32) {
    %c0_i32 = arith.constant 0 : i32
    %c0_i32_0 = arith.constant 0 : i32
    %c0_i32_1 = arith.constant 0 : i32
    return %c0_i32, %c0_i32_0 : i32, i32
  }
  func.func @transform_10(%arg0: i32) -> (i32, i32) {
    %c0_i32 = arith.constant 0 : i32
    %c0_i32_0 = arith.constant 0 : i32
    %c0_i32_1 = arith.constant 0 : i32
    return %c0_i32, %c0_i32_0 : i32, i32
  }
  func.func @transform_11(%arg0: i32) -> (i32, i32) {
    %c0_i32 = arith.constant 0 : i32
    %c0_i32_0 = arith.constant 0 : i32
    %c0_i32_1 = arith.constant 0 : i32
    return %c0_i32, %c0_i32_0 : i32, i32
  }
  func.func @transform_12(%arg0: i32) -> (i32, i32) {
    %c0_i32 = arith.constant 0 : i32
    %c0_i32_0 = arith.constant 0 : i32
    %c0_i32_1 = arith.constant 0 : i32
    return %c0_i32, %c0_i32_0 : i32, i32
  }
  func.func @transform_13(%arg0: i32) -> (i32, i32) {
    %c0_i32 = arith.constant 0 : i32
    %c0_i32_0 = arith.constant 0 : i32
    %c0_i32_1 = arith.constant 0 : i32
    return %c0_i32, %c0_i32_0 : i32, i32
  }
  func.func @transform_14(%arg0: i32) -> (i32, i32) {
    %c0_i32 = arith.constant 0 : i32
    %c0_i32_0 = arith.constant 0 : i32
    return %arg0, %c0_i32 : i32, i32
  }
}

</mosaic_0001>

<llo_original>
// kernel: net1d_forward.1
$region0: #{net1d_forward.1}
  #allocation0 [shape = 'u32[]', space=smem, size = 0x4, offset = 0x4, fixed_abs, tag = 'smem constant byte address 0x4 - core index']
  #allocation1 [shape = 'u32[144,128]{1,0:T(1,128)}', space=vmem, size = 0x12000, scoped, tag = 'internal scratch']
  %s0 = inlined_call_operand.vmem [shape: f32[32,4], index: 0, kind: input, shape index: {}]
  %s1 = inlined_call_operand.vmem [shape: f32[32,1], index: 1, kind: input, shape index: {}]
  %s2 = inlined_call_operand.vmem [shape: f32[32,1], index: 2, kind: input, shape index: {}]
  %s3 = inlined_call_operand.vmem [shape: f32[2,32], index: 3, kind: input, shape index: {}]
  %s4 = inlined_call_operand.vmem [shape: f32[3,4,64], index: 4, kind: input, shape index: {}]
  %s5 = inlined_call_operand.vmem [shape: f32[1,64], index: 5, kind: input, shape index: {}]
  %s6 = inlined_call_operand.vmem [shape: f32[3,64,128], index: 6, kind: input, shape index: {}]
  %s7 = inlined_call_operand.vmem [shape: f32[1,128], index: 7, kind: input, shape index: {}]
  %s8 = inlined_call_operand.vmem [shape: f32[3,128,256], index: 8, kind: input, shape index: {}]
  %s9 = inlined_call_operand.vmem [shape: f32[1,256], index: 9, kind: input, shape index: {}]
  %s10 = inlined_call_operand.vmem [shape: f32[256,128], index: 10, kind: input, shape index: {}]
  %s11 = inlined_call_operand.vmem [shape: f32[1,128], index: 11, kind: input, shape index: {}]
  %s12 = inlined_call_operand.vmem [shape: f32[128,128], index: 12, kind: input, shape index: {}]
  %s13 = inlined_call_operand.vmem [shape: f32[1,128], index: 13, kind: input, shape index: {}]
  %s14 = inlined_call_operand.hbm [shape: f32[2,128], index: 14, kind: output, shape index: {}]
  %s15 = sld [smem:[#allocation0]]
  $region66: #{net1d_forward.1} parent=0
    _
  %s17 = ssub.s32 1, %s15
  %s18 = scalar_select 0, %s17, %s15
  $region1: #{net1d_forward.1} parent=0
    #allocation2 [shape = 'u8[1024]{0}', space=vmem, size = 0x400, scoped, tag = 'output window, operand 0, single buffered']
    #allocation3 [shape = 's32[1]{0}', space=sflag, size = 0x4, scoped, tag = 'scoped memory for net1d_forward.1']
    %19 = vsyncpa [#allocation3], 0
    // Predicated region
    $region2: #{net1d_forward.1} parent=1 // pred_check
      _
    $region3: #{net1d_forward.1} parent=1 // pred_check_branch
      %21 = sbr.rel (0) target = $region5
    $region4: #{net1d_forward.1} parent=1 // pred_region
      _
    $region5: #{net1d_forward.1} parent=1 // pred_fallthru
      _
    // Predicated region
    $region6: #{net1d_forward.1} parent=1 // pred_check
      _
    $region7: #{net1d_forward.1} parent=1 // pred_check_branch
      %23 = sbr.rel (0) target = $region9
    $region8: #{net1d_forward.1} parent=1 // pred_region
      _
    $region9: #{net1d_forward.1} parent=1 // pred_fallthru
      _
    // Predicated region
    $region10: #{net1d_forward.1} parent=1 // pred_check
      _
    $region11: #{net1d_forward.1} parent=1 // pred_check_branch
      %25 = sbr.rel (0) target = $region13
    $region12: #{net1d_forward.1} parent=1 // pred_region
      _
    $region13: #{net1d_forward.1} parent=1 // pred_fallthru
      _
    // Predicated region
    $region14: #{net1d_forward.1} parent=1 // pred_check
      _
    $region15: #{net1d_forward.1} parent=1 // pred_check_branch
      %27 = sbr.rel (0) target = $region17
    $region16: #{net1d_forward.1} parent=1 // pred_region
      _
    $region17: #{net1d_forward.1} parent=1 // pred_fallthru
      _
    // Predicated region
    $region18: #{net1d_forward.1} parent=1 // pred_check
      _
    $region19: #{net1d_forward.1} parent=1 // pred_check_branch
      %29 = sbr.rel (0) target = $region21
    $region20: #{net1d_forward.1} parent=1 // pred_region
      _
    $region21: #{net1d_forward.1} parent=1 // pred_fallthru
      _
    // Predicated region
    $region22: #{net1d_forward.1} parent=1 // pred_check
      _
    $region23: #{net1d_forward.1} parent=1 // pred_check_branch
      %31 = sbr.rel (0) target = $region25
    $region24: #{net1d_forward.1} parent=1 // pred_region
      _
    $region25: #{net1d_forward.1} parent=1 // pred_fallthru
      _
    // Predicated region
    $region26: #{net1d_forward.1} parent=1 // pred_check
      _
    $region27: #{net1d_forward.1} parent=1 // pred_check_branch
      %33 = sbr.rel (0) target = $region29
    $region28: #{net1d_forward.1} parent=1 // pred_region
      _
    $region29: #{net1d_forward.1} parent=1 // pred_fallthru
      _
    // Predicated region
    $region30: #{net1d_forward.1} parent=1 // pred_check
      _
    $region31: #{net1d_forward.1} parent=1 // pred_check_branch
      %35 = sbr.rel (0) target = $region33
    $region32: #{net1d_forward.1} parent=1 // pred_region
      _
    $region33: #{net1d_forward.1} parent=1 // pred_fallthru
      _
    // Predicated region
    $region34: #{net1d_forward.1} parent=1 // pred_check
      _
    $region35: #{net1d_forward.1} parent=1 // pred_check_branch
      %37 = sbr.rel (0) target = $region37
    $region36: #{net1d_forward.1} parent=1 // pred_region
      _
    $region37: #{net1d_forward.1} parent=1 // pred_fallthru
      _
    // Predicated region
    $region38: #{net1d_forward.1} parent=1 // pred_check
      _
    $region39: #{net1d_forward.1} parent=1 // pred_check_branch
      %39 = sbr.rel (0) target = $region41
    $region40: #{net1d_forward.1} parent=1 // pred_region
      _
    $region41: #{net1d_forward.1} parent=1 // pred_fallthru
      _
    // Predicated region
    $region42: #{net1d_forward.1} parent=1 // pred_check
      _
    $region43: #{net1d_forward.1} parent=1 // pred_check_branch
      %41 = sbr.rel (0) target = $region45
    $region44: #{net1d_forward.1} parent=1 // pred_region
      _
    $region45: #{net1d_forward.1} parent=1 // pred_fallthru
      _
    // Predicated region
    $region46: #{net1d_forward.1} parent=1 // pred_check
      _
    $region47: #{net1d_forward.1} parent=1 // pred_check_branch
      %43 = sbr.rel (0) target = $region49
    $region48: #{net1d_forward.1} parent=1 // pred_region
      _
    $region49: #{net1d_forward.1} parent=1 // pred_fallthru
      _
    // Predicated region
    $region50: #{net1d_forward.1} parent=1 // pred_check
      _
    $region51: #{net1d_forward.1} parent=1 // pred_check_branch
      %45 = sbr.rel (0) target = $region53
    $region52: #{net1d_forward.1} parent=1 // pred_region
      _
    $region53: #{net1d_forward.1} parent=1 // pred_fallthru
      _
    // Predicated region
    $region54: #{net1d_forward.1} parent=1 // pred_check
      _
    $region55: #{net1d_forward.1} parent=1 // pred_check_branch
      %47 = sbr.rel (0) target = $region57
    $region56: #{net1d_forward.1} parent=1 // pred_region
      _
    $region57: #{net1d_forward.1} parent=1 // pred_fallthru
      _
    %v48 = vld [vmem:[%s1] sm:$0xff]
    %v49 = vld [vmem:[%s1 + $0x8] sm:$0xff]
    %v50 = vld [vmem:[%s1 + $0x10] sm:$0xff]
    %v51 = vld [vmem:[%s1 + $0x18] sm:$0xff]
    %v52 = vld [vmem:[%s2] sm:$0xff]
    %v53 = vld [vmem:[%s2 + $0x8] sm:$0xff]
    %v54 = vld [vmem:[%s2 + $0x10] sm:$0xff]
    %v55 = vld [vmem:[%s2 + $0x18] sm:$0xff]
    %v56 = vld [vmem:[%s0] sm:$0xff]
    %v57 = vld [vmem:[%s0 + $0x8] sm:$0xff]
    %v58 = vld [vmem:[%s0 + $0x10] sm:$0xff]
    %v59 = vld [vmem:[%s0 + $0x18] sm:$0xff]
    %v60 = vrot.slane %v56, 7
    %v61 = vrot.slane %v57, 7
    %v62 = vrot.slane %v58, 7
    %v63 = vrot.slane %v59, 7
    %v64 = vlaneseq
    %v65 = vshrl.u32 %v64, 7
    %vm66 = vcmp.lt.s32.totalorder %v65, 1
    %v67 = vsel %vm66, %v62, %v63
    %v68 = vsel %vm66, %v61, %v62
    %v69 = vsel %vm66, %v60, %v61
    %v70 = vsel %vm66, %v63, %v60
    %72 = vset.pattern.permute.xlu0 0
    %73 = vperm.xlu0 %72, %v48
    %v74 = vpop.permute.xlu0 %73
    %77 = vset.pattern.permute.xlu0 0
    %78 = vperm.xlu0 %77, %v49
    %v79 = vpop.permute.xlu0 %78
    %82 = vset.pattern.permute.xlu0 0
    %83 = vperm.xlu0 %82, %v50
    %v84 = vpop.permute.xlu0 %83
    %87 = vset.pattern.permute.xlu0 0
    %88 = vperm.xlu0 %87, %v51
    %v89 = vpop.permute.xlu0 %88
    %v91 = vmul.f32 %v70, %v74
    %v92 = vmul.f32 %v69, %v79
    %v93 = vmul.f32 %v68, %v84
    %v94 = vmul.f32 %v67, %v89
    %v95 = vrot.slane %v56, 1
    %v96 = vrot.slane %v57, 1
    %v97 = vrot.slane %v58, 1
    %v98 = vrot.slane %v59, 1
    %vm99 = vcmp.lt.s32.totalorder %v65, 7
    %v100 = vsel %vm99, %v97, %v98
    %v101 = vsel %vm99, %v96, %v97
    %v102 = vsel %vm99, %v95, %v96
    %v103 = vsel %vm99, %v98, %v95
    %105 = vset.pattern.permute.xlu0 0
    %106 = vperm.xlu0 %105, %v52
    %v107 = vpop.permute.xlu0 %106
    %110 = vset.pattern.permute.xlu0 0
    %111 = vperm.xlu0 %110, %v53
    %v112 = vpop.permute.xlu0 %111
    %115 = vset.pattern.permute.xlu0 0
    %116 = vperm.xlu0 %115, %v54
    %v117 = vpop.permute.xlu0 %116
    %120 = vset.pattern.permute.xlu0 0
    %121 = vperm.xlu0 %120, %v55
    %v122 = vpop.permute.xlu0 %121
    %v124 = vmul.f32 %v102, %v107
    %v125 = vmul.f32 %v101, %v112
    %v126 = vmul.f32 %v100, %v117
    %v127 = vmul.f32 %v103, %v122
    %v128 = vld [vmem:[%s4] sm:$0xf]
    %s129 = scalar_lea.vmem %s4, 4
    %v130 = vld [vmem:[%s129] sm:$0xf]
    %vm131 = vcmask 31744
    %v133 = vsel %vm131, %v56, 0
    %v136 = vsel %vm131, %v57, 0
    %v139 = vsel %vm131, %v58, 0
    %v142 = vsel %vm131, %v59, 0
    %vm144 = vcmask 1043456
    %v146 = vsel %vm144, %v130, 0
    %148 = vmatprep.subr.mxu0 0.0
    %149 = vmatpush1.msra.mxu0 %v146
    %150 = vmatprep.subr.mxu0 0.0
    %151 = vmatpush1.msra.mxu0 0.0
    %152 = vmatprep.subr.mxu0 0.0
    %153 = vmatpush1.msra.mxu0 0.0
    %154 = vmatprep.subr.mxu0 0.0
    %155 = vmatpush1.msra.mxu0 0.0
    %156 = vmatprep.subr.mxu0 0.0
    %157 = vmatpush1.msra.mxu0 0.0
    %158 = vmatprep.subr.mxu0 0.0
    %159 = vmatpush1.msra.mxu0 0.0
    %160 = vmatprep.subr.mxu0 0.0
    %161 = vmatpush1.msra.mxu0 0.0
    %162 = vmatprep.subr.mxu0 0.0
    %163 = vmatpush1.msra.mxu0 0.0
    %164 = vmatprep.subr.mxu0 0.0
    %165 = vmatpush1.msra.mxu0 0.0
    %166 = vmatprep.subr.mxu0 0.0
    %167 = vmatpush1.msra.mxu0 0.0
    %168 = vmatprep.subr.mxu0 0.0
    %169 = vmatpush1.msra.mxu0 0.0
    %170 = vmatprep.subr.mxu0 0.0
    %171 = vmatpush1.msra.mxu0 0.0
    %172 = vmatprep.subr.mxu0 0.0
    %173 = vmatpush1.msra.mxu0 0.0
    %174 = vmatprep.subr.mxu0 0.0
    %175 = vmatpush1.msra.mxu0 0.0
    %176 = vmatprep.subr.mxu0 0.0
    %177 = vmatpush1.msra.mxu0 0.0
    %178 = vmatprep.subr.mxu0 0.0
    %179 = vmatpush1.msra.mxu0 0.0
    %180 = vmatprep.subr.mxu0 0.0
    %181 = vmatpush1.msra.mxu0 0.0
    %182 = vmatprep.subr.mxu0 0.0
    %183 = vmatpush1.msra.mxu0 0.0
    %184 = vmatprep.subr.mxu0 0.0
    %185 = vmatpush1.msra.mxu0 0.0
    %186 = vmatprep.subr.mxu0 0.0
    %187 = vmatpush1.msra.mxu0 0.0
    %188 = vmatprep.subr.mxu0 0.0
    %189 = vmatpush1.msra.mxu0 0.0
    %190 = vmatprep.subr.mxu0 0.0
    %191 = vmatpush1.msra.mxu0 0.0
    %192 = vmatprep.subr.mxu0 0.0
    %193 = vmatpush1.msra.mxu0 0.0
    %194 = vmatprep.subr.mxu0 0.0
    %195 = vmatpush1.msra.mxu0 0.0
    %196 = vmatprep.subr.mxu0 0.0
    %197 = vmatpush1.msra.mxu0 0.0
    %198 = vmatprep.subr.mxu0 0.0
    %199 = vmatpush1.msra.mxu0 0.0
    %200 = vmatprep.subr.mxu0 0.0
    %201 = vmatpush1.msra.mxu0 0.0
    %202 = vmatprep.subr.mxu0 0.0
    %203 = vmatpush1.msra.mxu0 0.0
    %204 = vmatprep.subr.mxu0 0.0
    %205 = vmatpush1.msra.mxu0 0.0
    %206 = vmatprep.subr.mxu0 0.0
    %207 = vmatpush1.msra.mxu0 0.0
    %208 = vmatprep.subr.mxu0 0.0
    %209 = vmatpush1.msra.mxu0 0.0
    %210 = vmatprep.subr.mxu0 0.0
    %211 = vmatpush1.msra.mxu0 0.0
    %212 = vmatprep.mubr.f32.mxu0 0.0
    %213 = vmatmul.mubr.f32.gmra.mrb[0].mxu0 %v133
    %v214 = vpop.f32.mrb[0].mxu0
    %v215 = vadd.f32 0.0, %v214
    %v216 = vpop.f32.mrb[0].mxu0
    %217 = vmatprep.mubr.f32.mxu0 0.0
    %218 = vmatmul.mubr.f32.gmra.mrb[0].mxu0 %v136
    %v219 = vpop.f32.mrb[0].mxu0
    %v220 = vadd.f32 0.0, %v219
    %v221 = vpop.f32.mrb[0].mxu0
    %222 = vmatprep.mubr.f32.mxu0 0.0
    %223 = vmatmul.mubr.f32.gmra.mrb[0].mxu0 %v139
    %v224 = vpop.f32.mrb[0].mxu0
    %v225 = vadd.f32 0.0, %v224
    %v226 = vpop.f32.mrb[0].mxu0
    %227 = vmatprep.mubr.f32.mxu0 0.0
    %228 = vmatmul.mubr.f32.gmra.mrb[0].mxu0 %v142
    %v229 = vpop.f32.mrb[0].mxu0
    %v230 = vadd.f32 0.0, %v229
    %v231 = vpop.f32.mrb[0].mxu0
    %232 = vdwg.mxu0
    %v234 = vsel %vm131, %v91, 0
    %v237 = vsel %vm131, %v92, 0
    %v240 = vsel %vm131, %v93, 0
    %v243 = vsel %vm131, %v94, 0
    %v246 = vsel %vm144, %v128, 0
    %248 = vmatprep.subr.mxu0 0.0
    %249 = vmatpush1.msra.mxu0 %v246
    %250 = vmatprep.subr.mxu0 0.0
    %251 = vmatpush1.msra.mxu0 0.0
    %252 = vmatprep.subr.mxu0 0.0
    %253 = vmatpush1.msra.mxu0 0.0
    %254 = vmatprep.subr.mxu0 0.0
    %255 = vmatpush1.msra.mxu0 0.0
    %256 = vmatprep.subr.mxu0 0.0
    %257 = vmatpush1.msra.mxu0 0.0
    %258 = vmatprep.subr.mxu0 0.0
    %259 = vmatpush1.msra.mxu0 0.0
    %260 = vmatprep.subr.mxu0 0.0
    %261 = vmatpush1.msra.mxu0 0.0
    %262 = vmatprep.subr.mxu0 0.0
    %263 = vmatpush1.msra.mxu0 0.0
    %264 = vmatprep.subr.mxu0 0.0
    %265 = vmatpush1.msra.mxu0 0.0
    %266 = vmatprep.subr.mxu0 0.0
    %267 = vmatpush1.msra.mxu0 0.0
    %268 = vmatprep.subr.mxu0 0.0
    %269 = vmatpush1.msra.mxu0 0.0
    %270 = vmatprep.subr.mxu0 0.0
    %271 = vmatpush1.msra.mxu0 0.0
    %272 = vmatprep.subr.mxu0 0.0
    %273 = vmatpush1.msra.mxu0 0.0
    %274 = vmatprep.subr.mxu0 0.0
    %275 = vmatpush1.msra.mxu0 0.0
    %276 = vmatprep.subr.mxu0 0.0
    %277 = vmatpush1.msra.mxu0 0.0
    %278 = vmatprep.subr.mxu0 0.0
    %279 = vmatpush1.msra.mxu0 0.0
    %280 = vmatprep.subr.mxu0 0.0
    %281 = vmatpush1.msra.mxu0 0.0
    %282 = vmatprep.subr.mxu0 0.0
    %283 = vmatpush1.msra.mxu0 0.0
    %284 = vmatprep.subr.mxu0 0.0
    %285 = vmatpush1.msra.mxu0 0.0
    %286 = vmatprep.subr.mxu0 0.0
    %287 = vmatpush1.msra.mxu0 0.0
    %288 = vmatprep.subr.mxu0 0.0
    %289 = vmatpush1.msra.mxu0 0.0
    %290 = vmatprep.subr.mxu0 0.0
    %291 = vmatpush1.msra.mxu0 0.0
    %292 = vmatprep.subr.mxu0 0.0
    %293 = vmatpush1.msra.mxu0 0.0
    %294 = vmatprep.subr.mxu0 0.0
    %295 = vmatpush1.msra.mxu0 0.0
    %296 = vmatprep.subr.mxu0 0.0
    %297 = vmatpush1.msra.mxu0 0.0
    %298 = vmatprep.subr.mxu0 0.0
    %299 = vmatpush1.msra.mxu0 0.0
    %300 = vmatprep.subr.mxu0 0.0
    %301 = vmatpush1.msra.mxu0 0.0
    %302 = vmatprep.subr.mxu0 0.0
    %303 = vmatpush1.msra.mxu0 0.0
    %304 = vmatprep.subr.mxu0 0.0
    %305 = vmatpush1.msra.mxu0 0.0
    %306 = vmatprep.subr.mxu0 0.0
    %307 = vmatpush1.msra.mxu0 0.0
    %308 = vmatprep.subr.mxu0 0.0
    %309 = vmatpush1.msra.mxu0 0.0
    %310 = vmatprep.subr.mxu0 0.0
    %311 = vmatpush1.msra.mxu0 0.0
    %312 = vmatprep.mubr.f32.mxu0 0.0
    %313 = vmatmul.mubr.f32.gmra.mrb[0].mxu0 %v234
    %v314 = vpop.f32.mrb[0].mxu0
    %v315 = vadd.f32 %v215, %v314
    %v316 = vpop.f32.mrb[0].mxu0
    %317 = vmatprep.mubr.f32.mxu0 0.0
    %318 = vmatmul.mubr.f32.gmra.mrb[0].mxu0 %v237
    %v319 = vpop.f32.mrb[0].mxu0
    %v320 = vadd.f32 %v220, %v319
    %v321 = vpop.f32.mrb[0].mxu0
    %322 = vmatprep.mubr.f32.mxu0 0.0
    %323 = vmatmul.mubr.f32.gmra.mrb[0].mxu0 %v240
    %v324 = vpop.f32.mrb[0].mxu0
    %v325 = vadd.f32 %v225, %v324
    %v326 = vpop.f32.mrb[0].mxu0
    %327 = vmatprep.mubr.f32.mxu0 0.0
    %328 = vmatmul.mubr.f32.gmra.mrb[0].mxu0 %v243
    %v329 = vpop.f32.mrb[0].mxu0
    %v330 = vadd.f32 %v230, %v329
    %v331 = vpop.f32.mrb[0].mxu0
    %332 = vdwg.mxu0
    %s333 = scalar_lea.vmem %s4, 8
    %v334 = vld [vmem:[%s333] sm:$0xf]
    %v336 = vsel %vm131, %v124, 0
    %v339 = vsel %vm131, %v125, 0
    %v342 = vsel %vm131, %v126, 0
    %v345 = vsel %vm131, %v127, 0
    %v348 = vsel %vm144, %v334, 0
    %350 = vmatprep.subr.mxu0 0.0
    %351 = vmatpush1.msra.mxu0 %v348
    %352 = vmatprep.subr.mxu0 0.0
    %353 = vmatpush1.msra.mxu0 0.0
    %354 = vmatprep.subr.mxu0 0.0
    %355 = vmatpush1.msra.mxu0 0.0
    %356 = vmatprep.subr.mxu0 0.0
    %357 = vmatpush1.msra.mxu0 0.0
    %358 = vmatprep.subr.mxu0 0.0
    %359 = vmatpush1.msra.mxu0 0.0
    %360 = vmatprep.subr.mxu0 0.0
    %361 = vmatpush1.msra.mxu0 0.0
    %362 = vmatprep.subr.mxu0 0.0
    %363 = vmatpush1.msra.mxu0 0.0
    %364 = vmatprep.subr.mxu0 0.0
    %365 = vmatpush1.msra.mxu0 0.0
    %366 = vmatprep.subr.mxu0 0.0
    %367 = vmatpush1.msra.mxu0 0.0
    %368 = vmatprep.subr.mxu0 0.0
    %369 = vmatpush1.msra.mxu0 0.0
    %370 = vmatprep.subr.mxu0 0.0
    %371 = vmatpush1.msra.mxu0 0.0
    %372 = vmatprep.subr.mxu0 0.0
    %373 = vmatpush1.msra.mxu0 0.0
    %374 = vmatprep.subr.mxu0 0.0
    %375 = vmatpush1.msra.mxu0 0.0
    %376 = vmatprep.subr.mxu0 0.0
    %377 = vmatpush1.msra.mxu0 0.0
    %378 = vmatprep.subr.mxu0 0.0
    %379 = vmatpush1.msra.mxu0 0.0
    %380 = vmatprep.subr.mxu0 0.0
    %381 = vmatpush1.msra.mxu0 0.0
    %382 = vmatprep.subr.mxu0 0.0
    %383 = vmatpush1.msra.mxu0 0.0
    %384 = vmatprep.subr.mxu0 0.0
    %385 = vmatpush1.msra.mxu0 0.0
    %386 = vmatprep.subr.mxu0 0.0
    %387 = vmatpush1.msra.mxu0 0.0
    %388 = vmatprep.subr.mxu0 0.0
    %389 = vmatpush1.msra.mxu0 0.0
    %390 = vmatprep.subr.mxu0 0.0
    %391 = vmatpush1.msra.mxu0 0.0
    %392 = vmatprep.subr.mxu0 0.0
    %393 = vmatpush1.msra.mxu0 0.0
    %394 = vmatprep.subr.mxu0 0.0
    %395 = vmatpush1.msra.mxu0 0.0
    %396 = vmatprep.subr.mxu0 0.0
    %397 = vmatpush1.msra.mxu0 0.0
    %398 = vmatprep.subr.mxu0 0.0
    %399 = vmatpush1.msra.mxu0 0.0
    %400 = vmatprep.subr.mxu0 0.0
    %401 = vmatpush1.msra.mxu0 0.0
    %402 = vmatprep.subr.mxu0 0.0
    %403 = vmatpush1.msra.mxu0 0.0
    %404 = vmatprep.subr.mxu0 0.0
    %405 = vmatpush1.msra.mxu0 0.0
    %406 = vmatprep.subr.mxu0 0.0
    %407 = vmatpush1.msra.mxu0 0.0
    %408 = vmatprep.subr.mxu0 0.0
    %409 = vmatpush1.msra.mxu0 0.0
    %410 = vmatprep.subr.mxu0 0.0
    %411 = vmatpush1.msra.mxu0 0.0
    %412 = vmatprep.subr.mxu0 0.0
    %413 = vmatpush1.msra.mxu0 0.0
    %414 = vmatprep.mubr.f32.mxu0 0.0
    %415 = vmatmul.mubr.f32.gmra.mrb[0].mxu0 %v336
    %v416 = vpop.f32.mrb[0].mxu0
    %v417 = vadd.f32 0.0, %v416
    %v418 = vpop.f32.mrb[0].mxu0
    %419 = vmatprep.mubr.f32.mxu0 0.0
    %420 = vmatmul.mubr.f32.gmra.mrb[0].mxu0 %v339
    %v421 = vpop.f32.mrb[0].mxu0
    %v422 = vadd.f32 0.0, %v421
    %v423 = vpop.f32.mrb[0].mxu0
    %424 = vmatprep.mubr.f32.mxu0 0.0
    %425 = vmatmul.mubr.f32.gmra.mrb[0].mxu0 %v342
    %v426 = vpop.f32.mrb[0].mxu0
    %v427 = vadd.f32 0.0, %v426
    %v428 = vpop.f32.mrb[0].mxu0
    %429 = vmatprep.mubr.f32.mxu0 0.0
    %430 = vmatmul.mubr.f32.gmra.mrb[0].mxu0 %v345
    %v431 = vpop.f32.mrb[0].mxu0
    %v432 = vadd.f32 0.0, %v431
    %v433 = vpop.f32.mrb[0].mxu0
    %434 = vdwg.mxu0
    %v435 = vadd.f32 %v315, %v417
    %v436 = vadd.f32 %v320, %v422
    %v437 = vadd.f32 %v325, %v427
    %v438 = vadd.f32 %v330, %v432
    %v439 = vld [vmem:[%s5] sm:$0x1]
    %v441 = vlaneseq
    %v442 = vshrl.u32 %v441, 7
    %v443 = vsub.s32 0, %v442
    %v444 = vrot.slane %v439, %v443
    %v446 = vadd.f32 %v435, %v444
    %v447 = vadd.f32 %v436, %v444
    %v448 = vadd.f32 %v437, %v444
    %v449 = vadd.f32 %v438, %v444
    %v450 = vmax.f32 %v446, 0.0
    %v451 = vmax.f32 %v447, 0.0
    %v452 = vmax.f32 %v448, 0.0
    %v453 = vmax.f32 %v449, 0.0
    %v454 = vrot.slane %v450, 7
    %v455 = vrot.slane %v451, 7
    %v456 = vrot.slane %v452, 7
    %v457 = vrot.slane %v453, 7
    %v458 = vsel %vm66, %v456, %v457
    %v459 = vsel %vm66, %v455, %v456
    %v460 = vsel %vm66, %v454, %v455
    %v461 = vsel %vm66, %v457, %v454
    %v462 = vmul.f32 %v461, %v74
    %v463 = vmul.f32 %v460, %v79
    %v464 = vmul.f32 %v459, %v84
    %v465 = vmul.f32 %v458, %v89
    %v466 = vrot.slane %v450, 1
    %v467 = vrot.slane %v451, 1
    %v468 = vrot.slane %v452, 1
    %v469 = vrot.slane %v453, 1
    %v470 = vsel %vm99, %v468, %v469
    %v471 = vsel %vm99, %v467, %v468
    %v472 = vsel %vm99, %v466, %v467
    %v473 = vsel %vm99, %v469, %v466
    %v474 = vmul.f32 %v472, %v107
    %v475 = vmul.f32 %v471, %v112
    %v476 = vmul.f32 %v470, %v117
    %v477 = vmul.f32 %v473, %v122
    %v478 = vld [vmem:[%s6] sm:$0xff]
    %v479 = vld [vmem:[%s6 + $0x8] sm:$0xff]
    %v480 = vld [vmem:[%s6 + $0x10] sm:$0xff]
    %v481 = vld [vmem:[%s6 + $0x18] sm:$0xff]
    %v482 = vld [vmem:[%s6 + $0x20] sm:$0xff]
    %v483 = vld [vmem:[%s6 + $0x28] sm:$0xff]
    %v484 = vld [vmem:[%s6 + $0x30] sm:$0xff]
    %v485 = vld [vmem:[%s6 + $0x38] sm:$0xff]
    %s486 = scalar_lea.vmem %s6, 64
    %v487 = vld [vmem:[%s486] sm:$0xff]
    %v488 = vld [vmem:[%s486 + $0x8] sm:$0xff]
    %v489 = vld [vmem:[%s486 + $0x10] sm:$0xff]
    %v490 = vld [vmem:[%s486 + $0x18] sm:$0xff]
    %v491 = vld [vmem:[%s486 + $0x20] sm:$0xff]
    %v492 = vld [vmem:[%s486 + $0x28] sm:$0xff]
    %v493 = vld [vmem:[%s486 + $0x30] sm:$0xff]
    %v494 = vld [vmem:[%s486 + $0x38] sm:$0xff]
    %vm495 = vcmask 523264
    %v497 = vsel %vm495, %v450, 0
    %v500 = vsel %vm495, %v451, 0
    %v503 = vsel %vm495, %v452, 0
    %v506 = vsel %vm495, %v453, 0
    %508 = vmatprep.subr.mxu0 0.0
    %509 = vmatpush1.msra.mxu0 %v487
    %510 = vmatprep.subr.mxu0 0.0
    %511 = vmatpush1.msra.mxu0 %v488
    %512 = vmatprep.subr.mxu0 0.0
    %513 = vmatpush1.msra.mxu0 %v489
    %514 = vmatprep.subr.mxu0 0.0
    %515 = vmatpush1.msra.mxu0 %v490
    %516 = vmatprep.subr.mxu0 0.0
    %517 = vmatpush1.msra.mxu0 %v491
    %518 = vmatprep.subr.mxu0 0.0
    %519 = vmatpush1.msra.mxu0 %v492
    %520 = vmatprep.subr.mxu0 0.0
    %521 = vmatpush1.msra.mxu0 %v493
    %522 = vmatprep.subr.mxu0 0.0
    %523 = vmatpush1.msra.mxu0 %v494
    %524 = vmatprep.subr.mxu0 0.0
    %525 = vmatpush1.msra.mxu0 0.0
    %526 = vmatprep.subr.mxu0 0.0
    %527 = vmatpush1.msra.mxu0 0.0
    %528 = vmatprep.subr.mxu0 0.0
    %529 = vmatpush1.msra.mxu0 0.0
    %530 = vmatprep.subr.mxu0 0.0
    %531 = vmatpush1.msra.mxu0 0.0
    %532 = vmatprep.subr.mxu0 0.0
    %533 = vmatpush1.msra.mxu0 0.0
    %534 = vmatprep.subr.mxu0 0.0
    %535 = vmatpush1.msra.mxu0 0.0
    %536 = vmatprep.subr.mxu0 0.0
    %537 = vmatpush1.msra.mxu0 0.0
    %538 = vmatprep.subr.mxu0 0.0
    %539 = vmatpush1.msra.mxu0 0.0
    %540 = vmatprep.subr.mxu0 0.0
    %541 = vmatpush1.msra.mxu0 0.0
    %542 = vmatprep.subr.mxu0 0.0
    %543 = vmatpush1.msra.mxu0 0.0
    %544 = vmatprep.subr.mxu0 0.0
    %545 = vmatpush1.msra.mxu0 0.0
    %546 = vmatprep.subr.mxu0 0.0
    %547 = vmatpush1.msra.mxu0 0.0
    %548 = vmatprep.subr.mxu0 0.0
    %549 = vmatpush1.msra.mxu0 0.0
    %550 = vmatprep.subr.mxu0 0.0
    %551 = vmatpush1.msra.mxu0 0.0
    %552 = vmatprep.subr.mxu0 0.0
    %553 = vmatpush1.msra.mxu0 0.0
    %554 = vmatprep.subr.mxu0 0.0
    %555 = vmatpush1.msra.mxu0 0.0
    %556 = vmatprep.subr.mxu0 0.0
    %557 = vmatpush1.msra.mxu0 0.0
    %558 = vmatprep.subr.mxu0 0.0
    %559 = vmatpush1.msra.mxu0 0.0
    %560 = vmatprep.subr.mxu0 0.0
    %561 = vmatpush1.msra.mxu0 0.0
    %562 = vmatprep.subr.mxu0 0.0
    %563 = vmatpush1.msra.mxu0 0.0
    %564 = vmatprep.subr.mxu0 0.0
    %565 = vmatpush1.msra.mxu0 0.0
    %566 = vmatprep.subr.mxu0 0.0
    %567 = vmatpush1.msra.mxu0 0.0
    %568 = vmatprep.subr.mxu0 0.0
    %569 = vmatpush1.msra.mxu0 0.0
    %570 = vmatprep.subr.mxu0 0.0
    %571 = vmatpush1.msra.mxu0 0.0
    %572 = vmatprep.mubr.f32.mxu0 0.0
    %573 = vmatmul.mubr.f32.gmra.mrb[0].mxu0 %v497
    %v574 = vpop.f32.mrb[0].mxu0
    %v575 = vadd.f32 0.0, %v574
    %v576 = vpop.f32.mrb[0].mxu0
    %577 = vmatprep.mubr.f32.mxu0 0.0
    %578 = vmatmul.mubr.f32.gmra.mrb[0].mxu0 %v500
    %v579 = vpop.f32.mrb[0].mxu0
    %v580 = vadd.f32 0.0, %v579
    %v581 = vpop.f32.mrb[0].mxu0
    %582 = vmatprep.mubr.f32.mxu0 0.0
    %583 = vmatmul.mubr.f32.gmra.mrb[0].mxu0 %v503
    %v584 = vpop.f32.mrb[0].mxu0
    %v585 = vadd.f32 0.0, %v584
    %v586 = vpop.f32.mrb[0].mxu0
    %587 = vmatprep.mubr.f32.mxu0 0.0
    %588 = vmatmul.mubr.f32.gmra.mrb[0].mxu0 %v506
    %v589 = vpop.f32.mrb[0].mxu0
    %v590 = vadd.f32 0.0, %v589
    %v591 = vpop.f32.mrb[0].mxu0
    %592 = vdwg.mxu0
    %v594 = vsel %vm495, %v462, 0
    %v597 = vsel %vm495, %v463, 0
    %v600 = vsel %vm495, %v464, 0
    %v603 = vsel %vm495, %v465, 0
    %605 = vmatprep.subr.mxu0 0.0
    %606 = vmatpush1.msra.mxu0 %v478
    %607 = vmatprep.subr.mxu0 0.0
    %608 = vmatpush1.msra.mxu0 %v479
    %609 = vmatprep.subr.mxu0 0.0
    %610 = vmatpush1.msra.mxu0 %v480
    %611 = vmatprep.subr.mxu0 0.0
    %612 = vmatpush1.msra.mxu0 %v481
    %613 = vmatprep.subr.mxu0 0.0
    %614 = vmatpush1.msra.mxu0 %v482
    %615 = vmatprep.subr.mxu0 0.0
    %616 = vmatpush1.msra.mxu0 %v483
    %617 = vmatprep.subr.mxu0 0.0
    %618 = vmatpush1.msra.mxu0 %v484
    %619 = vmatprep.subr.mxu0 0.0
    %620 = vmatpush1.msra.mxu0 %v485
    %621 = vmatprep.subr.mxu0 0.0
    %622 = vmatpush1.msra.mxu0 0.0
    %623 = vmatprep.subr.mxu0 0.0
    %624 = vmatpush1.msra.mxu0 0.0
    %625 = vmatprep.subr.mxu0 0.0
    %626 = vmatpush1.msra.mxu0 0.0
    %627 = vmatprep.subr.mxu0 0.0
    %628 = vmatpush1.msra.mxu0 0.0
    %629 = vmatprep.subr.mxu0 0.0
    %630 = vmatpush1.msra.mxu0 0.0
    %631 = vmatprep.subr.mxu0 0.0
    %632 = vmatpush1.msra.mxu0 0.0
    %633 = vmatprep.subr.mxu0 0.0
    %634 = vmatpush1.msra.mxu0 0.0
    %635 = vmatprep.subr.mxu0 0.0
    %636 = vmatpush1.msra.mxu0 0.0
    %637 = vmatprep.subr.mxu0 0.0
    %638 = vmatpush1.msra.mxu0 0.0
    %639 = vmatprep.subr.mxu0 0.0
    %640 = vmatpush1.msra.mxu0 0.0
    %641 = vmatprep.subr.mxu0 0.0
    %642 = vmatpush1.msra.mxu0 0.0
    %643 = vmatprep.subr.mxu0 0.0
    %644 = vmatpush1.msra.mxu0 0.0
    %645 = vmatprep.subr.mxu0 0.0
    %646 = vmatpush1.msra.mxu0 0.0
    %647 = vmatprep.subr.mxu0 0.0
    %648 = vmatpush1.msra.mxu0 0.0
    %649 = vmatprep.subr.mxu0 0.0
    %650 = vmatpush1.msra.mxu0 0.0
    %651 = vmatprep.subr.mxu0 0.0
    %652 = vmatpush1.msra.mxu0 0.0
    %653 = vmatprep.subr.mxu0 0.0
    %654 = vmatpush1.msra.mxu0 0.0
    %655 = vmatprep.subr.mxu0 0.0
    %656 = vmatpush1.msra.mxu0 0.0
    %657 = vmatprep.subr.mxu0 0.0
    %658 = vmatpush1.msra.mxu0 0.0
    %659 = vmatprep.subr.mxu0 0.0
    %660 = vmatpush1.msra.mxu0 0.0
    %661 = vmatprep.subr.mxu0 0.0
    %662 = vmatpush1.msra.mxu0 0.0
    %663 = vmatprep.subr.mxu0 0.0
    %664 = vmatpush1.msra.mxu0 0.0
    %665 = vmatprep.subr.mxu0 0.0
    %666 = vmatpush1.msra.mxu0 0.0
    %667 = vmatprep.subr.mxu0 0.0
    %668 = vmatpush1.msra.mxu0 0.0
    %669 = vmatprep.mubr.f32.mxu0 0.0
    %670 = vmatmul.mubr.f32.gmra.mrb[0].mxu0 %v594
    %v671 = vpop.f32.mrb[0].mxu0
    %v672 = vadd.f32 %v575, %v671
    %v673 = vpop.f32.mrb[0].mxu0
    %674 = vmatprep.mubr.f32.mxu0 0.0
    %675 = vmatmul.mubr.f32.gmra.mrb[0].mxu0 %v597
    %v676 = vpop.f32.mrb[0].mxu0
    %v677 = vadd.f32 %v580, %v676
    %v678 = vpop.f32.mrb[0].mxu0
    %679 = vmatprep.mubr.f32.mxu0 0.0
    %680 = vmatmul.mubr.f32.gmra.mrb[0].mxu0 %v600
    %v681 = vpop.f32.mrb[0].mxu0
    %v682 = vadd.f32 %v585, %v681
    %v683 = vpop.f32.mrb[0].mxu0
    %684 = vmatprep.mubr.f32.mxu0 0.0
    %685 = vmatmul.mubr.f32.gmra.mrb[0].mxu0 %v603
    %v686 = vpop.f32.mrb[0].mxu0
    %v687 = vadd.f32 %v590, %v686
    %v688 = vpop.f32.mrb[0].mxu0
    %689 = vdwg.mxu0
    %s690 = scalar_lea.vmem %s6, 128
    %v691 = vld [vmem:[%s690] sm:$0xff]
    %v692 = vld [vmem:[%s690 + $0x8] sm:$0xff]
    %v693 = vld [vmem:[%s690 + $0x10] sm:$0xff]
    %v694 = vld [vmem:[%s690 + $0x18] sm:$0xff]
    %v695 = vld [vmem:[%s690 + $0x20] sm:$0xff]
    %v696 = vld [vmem:[%s690 + $0x28] sm:$0xff]
    %v697 = vld [vmem:[%s690 + $0x30] sm:$0xff]
    %v698 = vld [vmem:[%s690 + $0x38] sm:$0xff]
    %v700 = vsel %vm495, %v474, 0
    %v703 = vsel %vm495, %v475, 0
    %v706 = vsel %vm495, %v476, 0
    %v709 = vsel %vm495, %v477, 0
    %711 = vmatprep.subr.mxu0 0.0
    %712 = vmatpush1.msra.mxu0 %v691
    %713 = vmatprep.subr.mxu0 0.0
    %714 = vmatpush1.msra.mxu0 %v692
    %715 = vmatprep.subr.mxu0 0.0
    %716 = vmatpush1.msra.mxu0 %v693
    %717 = vmatprep.subr.mxu0 0.0
    %718 = vmatpush1.msra.mxu0 %v694
    %719 = vmatprep.subr.mxu0 0.0
    %720 = vmatpush1.msra.mxu0 %v695
    %721 = vmatprep.subr.mxu0 0.0
    %722 = vmatpush1.msra.mxu0 %v696
    %723 = vmatprep.subr.mxu0 0.0
    %724 = vmatpush1.msra.mxu0 %v697
    %725 = vmatprep.subr.mxu0 0.0
    %726 = vmatpush1.msra.mxu0 %v698
    %727 = vmatprep.subr.mxu0 0.0
    %728 = vmatpush1.msra.mxu0 0.0
    %729 = vmatprep.subr.mxu0 0.0
    %730 = vmatpush1.msra.mxu0 0.0
    %731 = vmatprep.subr.mxu0 0.0
    %732 = vmatpush1.msra.mxu0 0.0
    %733 = vmatprep.subr.mxu0 0.0
    %734 = vmatpush1.msra.mxu0 0.0
    %735 = vmatprep.subr.mxu0 0.0
    %736 = vmatpush1.msra.mxu0 0.0
    %737 = vmatprep.subr.mxu0 0.0
    %738 = vmatpush1.msra.mxu0 0.0
    %739 = vmatprep.subr.mxu0 0.0
    %740 = vmatpush1.msra.mxu0 0.0
    %741 = vmatprep.subr.mxu0 0.0
    %742 = vmatpush1.msra.mxu0 0.0
    %743 = vmatprep.subr.mxu0 0.0
    %744 = vmatpush1.msra.mxu0 0.0
    %745 = vmatprep.subr.mxu0 0.0
    %746 = vmatpush1.msra.mxu0 0.0
    %747 = vmatprep.subr.mxu0 0.0
    %748 = vmatpush1.msra.mxu0 0.0
    %749 = vmatprep.subr.mxu0 0.0
    %750 = vmatpush1.msra.mxu0 0.0
    %751 = vmatprep.subr.mxu0 0.0
    %752 = vmatpush1.msra.mxu0 0.0
    %753 = vmatprep.subr.mxu0 0.0
    %754 = vmatpush1.msra.mxu0 0.0
    %755 = vmatprep.subr.mxu0 0.0
    %756 = vmatpush1.msra.mxu0 0.0
    %757 = vmatprep.subr.mxu0 0.0
    %758 = vmatpush1.msra.mxu0 0.0
    %759 = vmatprep.subr.mxu0 0.0
    %760 = vmatpush1.msra.mxu0 0.0
    %761 = vmatprep.subr.mxu0 0.0
    %762 = vmatpush1.msra.mxu0 0.0
    %763 = vmatprep.subr.mxu0 0.0
    %764 = vmatpush1.msra.mxu0 0.0
    %765 = vmatprep.subr.mxu0 0.0
    %766 = vmatpush1.msra.mxu0 0.0
    %767 = vmatprep.subr.mxu0 0.0
    %768 = vmatpush1.msra.mxu0 0.0
    %769 = vmatprep.subr.mxu0 0.0
    %770 = vmatpush1.msra.mxu0 0.0
    %771 = vmatprep.subr.mxu0 0.0
    %772 = vmatpush1.msra.mxu0 0.0
    %773 = vmatprep.subr.mxu0 0.0
    %774 = vmatpush1.msra.mxu0 0.0
    %775 = vmatprep.mubr.f32.mxu0 0.0
    %776 = vmatmul.mubr.f32.gmra.mrb[0].mxu0 %v700
    %v777 = vpop.f32.mrb[0].mxu0
    %v778 = vadd.f32 0.0, %v777
    %v779 = vpop.f32.mrb[0].mxu0
    %780 = vmatprep.mubr.f32.mxu0 0.0
    %781 = vmatmul.mubr.f32.gmra.mrb[0].mxu0 %v703
    %v782 = vpop.f32.mrb[0].mxu0
    %v783 = vadd.f32 0.0, %v782
    %v784 = vpop.f32.mrb[0].mxu0
    %785 = vmatprep.mubr.f32.mxu0 0.0
    %786 = vmatmul.mubr.f32.gmra.mrb[0].mxu0 %v706
    %v787 = vpop.f32.mrb[0].mxu0
    %v788 = vadd.f32 0.0, %v787
    %v789 = vpop.f32.mrb[0].mxu0
    %790 = vmatprep.mubr.f32.mxu0 0.0
    %791 = vmatmul.mubr.f32.gmra.mrb[0].mxu0 %v709
    %v792 = vpop.f32.mrb[0].mxu0
    %v793 = vadd.f32 0.0, %v792
    %v794 = vpop.f32.mrb[0].mxu0
    %795 = vdwg.mxu0
    %v796 = vadd.f32 %v672, %v778
    %v797 = vadd.f32 %v677, %v783
    %v798 = vadd.f32 %v682, %v788
    %v799 = vadd.f32 %v687, %v793
    %v800 = vld [vmem:[%s7] sm:$0x1]
    %v802 = vlaneseq
    %v803 = vshrl.u32 %v802, 7
    %v804 = vsub.s32 0, %v803
    %v805 = vrot.slane %v800, %v804
    %v807 = vadd.f32 %v796, %v805
    %v808 = vadd.f32 %v797, %v805
    %v809 = vadd.f32 %v798, %v805
    %v810 = vadd.f32 %v799, %v805
    %v811 = vmax.f32 %v807, 0.0
    %v812 = vmax.f32 %v808, 0.0
    %v813 = vmax.f32 %v809, 0.0
    %v814 = vmax.f32 %v810, 0.0
    %v815 = vrot.slane %v811, 7
    %v816 = vrot.slane %v812, 7
    %v817 = vrot.slane %v813, 7
    %v818 = vrot.slane %v814, 7
    %v819 = vsel %vm66, %v817, %v818
    %v820 = vsel %vm66, %v816, %v817
    %v821 = vsel %vm66, %v815, %v816
    %v822 = vsel %vm66, %v818, %v815
    %v823 = vmul.f32 %v822, %v74
    %v824 = vmul.f32 %v821, %v79
    %v825 = vmul.f32 %v820, %v84
    %v826 = vmul.f32 %v819, %v89
    %v827 = vrot.slane %v811, 1
    %v828 = vrot.slane %v812, 1
    %v829 = vrot.slane %v813, 1
    %v830 = vrot.slane %v814, 1
    %v831 = vsel %vm99, %v829, %v830
    %v832 = vsel %vm99, %v828, %v829
    %v833 = vsel %vm99, %v827, %v828
    %v834 = vsel %vm99, %v830, %v827
    %v835 = vmul.f32 %v833, %v107
    %v836 = vmul.f32 %v832, %v112
    %v837 = vmul.f32 %v831, %v117
    %v838 = vmul.f32 %v834, %v122
    %v839 = vld [vmem:[%s8] sm:$0xff]
    %v840 = vld [vmem:[%s8 + $0x8] sm:$0xff]
    %v841 = vld [vmem:[%s8 + $0x10] sm:$0xff]
    %v842 = vld [vmem:[%s8 + $0x18] sm:$0xff]
    %v843 = vld [vmem:[%s8 + $0x20] sm:$0xff]
    %v844 = vld [vmem:[%s8 + $0x28] sm:$0xff]
    %v845 = vld [vmem:[%s8 + $0x30] sm:$0xff]
    %v846 = vld [vmem:[%s8 + $0x38] sm:$0xff]
    %v847 = vld [vmem:[%s8 + $0x40] sm:$0xff]
    %v848 = vld [vmem:[%s8 + $0x48] sm:$0xff]
    %v849 = vld [vmem:[%s8 + $0x50] sm:$0xff]
    %v850 = vld [vmem:[%s8 + $0x58] sm:$0xff]
    %v851 = vld [vmem:[%s8 + $0x60] sm:$0xff]
    %v852 = vld [vmem:[%s8 + $0x68] sm:$0xff]
    %v853 = vld [vmem:[%s8 + $0x70] sm:$0xff]
    %v854 = vld [vmem:[%s8 + $0x78] sm:$0xff]
    %v855 = vld [vmem:[%s8 + $0x80] sm:$0xff]
    %v856 = vld [vmem:[%s8 + $0x88] sm:$0xff]
    %v857 = vld [vmem:[%s8 + $0x90] sm:$0xff]
    %v858 = vld [vmem:[%s8 + $0x98] sm:$0xff]
    %v859 = vld [vmem:[%s8 + $0xa0] sm:$0xff]
    %v860 = vld [vmem:[%s8 + $0xa8] sm:$0xff]
    %v861 = vld [vmem:[%s8 + $0xb0] sm:$0xff]
    %v862 = vld [vmem:[%s8 + $0xb8] sm:$0xff]
    %v863 = vld [vmem:[%s8 + $0xc0] sm:$0xff]
    %v864 = vld [vmem:[%s8 + $0xc8] sm:$0xff]
    %v865 = vld [vmem:[%s8 + $0xd0] sm:$0xff]
    %v866 = vld [vmem:[%s8 + $0xd8] sm:$0xff]
    %v867 = vld [vmem:[%s8 + $0xe0] sm:$0xff]
    %v868 = vld [vmem:[%s8 + $0xe8] sm:$0xff]
    %v869 = vld [vmem:[%s8 + $0xf0] sm:$0xff]
    %v870 = vld [vmem:[%s8 + $0xf8] sm:$0xff]
    %s871 = scalar_lea.vmem %s8, 256
    %v872 = vld [vmem:[%s871] sm:$0xff]
    %v873 = vld [vmem:[%s871 + $0x8] sm:$0xff]
    %v874 = vld [vmem:[%s871 + $0x10] sm:$0xff]
    %v875 = vld [vmem:[%s871 + $0x18] sm:$0xff]
    %v876 = vld [vmem:[%s871 + $0x20] sm:$0xff]
    %v877 = vld [vmem:[%s871 + $0x28] sm:$0xff]
    %v878 = vld [vmem:[%s871 + $0x30] sm:$0xff]
    %v879 = vld [vmem:[%s871 + $0x38] sm:$0xff]
    %v880 = vld [vmem:[%s871 + $0x40] sm:$0xff]
    %v881 = vld [vmem:[%s871 + $0x48] sm:$0xff]
    %v882 = vld [vmem:[%s871 + $0x50] sm:$0xff]
    %v883 = vld [vmem:[%s871 + $0x58] sm:$0xff]
    %v884 = vld [vmem:[%s871 + $0x60] sm:$0xff]
    %v885 = vld [vmem:[%s871 + $0x68] sm:$0xff]
    %v886 = vld [vmem:[%s871 + $0x70] sm:$0xff]
    %v887 = vld [vmem:[%s871 + $0x78] sm:$0xff]
    %v888 = vld [vmem:[%s871 + $0x80] sm:$0xff]
    %v889 = vld [vmem:[%s871 + $0x88] sm:$0xff]
    %v890 = vld [vmem:[%s871 + $0x90] sm:$0xff]
    %v891 = vld [vmem:[%s871 + $0x98] sm:$0xff]
    %v892 = vld [vmem:[%s871 + $0xa0] sm:$0xff]
    %v893 = vld [vmem:[%s871 + $0xa8] sm:$0xff]
    %v894 = vld [vmem:[%s871 + $0xb0] sm:$0xff]
    %v895 = vld [vmem:[%s871 + $0xb8] sm:$0xff]
    %v896 = vld [vmem:[%s871 + $0xc0] sm:$0xff]
    %v897 = vld [vmem:[%s871 + $0xc8] sm:$0xff]
    %v898 = vld [vmem:[%s871 + $0xd0] sm:$0xff]
    %v899 = vld [vmem:[%s871 + $0xd8] sm:$0xff]
    %v900 = vld [vmem:[%s871 + $0xe0] sm:$0xff]
    %v901 = vld [vmem:[%s871 + $0xe8] sm:$0xff]
    %v902 = vld [vmem:[%s871 + $0xf0] sm:$0xff]
    %v903 = vld [vmem:[%s871 + $0xf8] sm:$0xff]
    %904 = vmatprep.subr.mxu0 %v873
    %905 = vmatpush1.msra.mxu0 %v872
    %906 = vmatprep.subr.mxu0 %v875
    %907 = vmatpush1.msra.mxu0 %v874
    %908 = vmatprep.subr.mxu0 %v877
    %909 = vmatpush1.msra.mxu0 %v876
    %910 = vmatprep.subr.mxu0 %v879
    %911 = vmatpush1.msra.mxu0 %v878
    %912 = vmatprep.subr.mxu0 %v881
    %913 = vmatpush1.msra.mxu0 %v880
    %914 = vmatprep.subr.mxu0 %v883
    %915 = vmatpush1.msra.mxu0 %v882
    %916 = vmatprep.subr.mxu0 %v885
    %917 = vmatpush1.msra.mxu0 %v884
    %918 = vmatprep.subr.mxu0 %v887
    %919 = vmatpush1.msra.mxu0 %v886
    %920 = vmatprep.subr.mxu0 %v889
    %921 = vmatpush1.msra.mxu0 %v888
    %922 = vmatprep.subr.mxu0 %v891
    %923 = vmatpush1.msra.mxu0 %v890
    %924 = vmatprep.subr.mxu0 %v893
    %925 = vmatpush1.msra.mxu0 %v892
    %926 = vmatprep.subr.mxu0 %v895
    %927 = vmatpush1.msra.mxu0 %v894
    %928 = vmatprep.subr.mxu0 %v897
    %929 = vmatpush1.msra.mxu0 %v896
    %930 = vmatprep.subr.mxu0 %v899
    %931 = vmatpush1.msra.mxu0 %v898
    %932 = vmatprep.subr.mxu0 %v901
    %933 = vmatpush1.msra.mxu0 %v900
    %934 = vmatprep.subr.mxu0 %v903
    %935 = vmatpush1.msra.mxu0 %v902
    %936 = vmatprep.subr.mxu0 0.0
    %937 = vmatpush1.msra.mxu0 0.0
    %938 = vmatprep.subr.mxu0 0.0
    %939 = vmatpush1.msra.mxu0 0.0
    %940 = vmatprep.subr.mxu0 0.0
    %941 = vmatpush1.msra.mxu0 0.0
    %942 = vmatprep.subr.mxu0 0.0
    %943 = vmatpush1.msra.mxu0 0.0
    %944 = vmatprep.subr.mxu0 0.0
    %945 = vmatpush1.msra.mxu0 0.0
    %946 = vmatprep.subr.mxu0 0.0
    %947 = vmatpush1.msra.mxu0 0.0
    %948 = vmatprep.subr.mxu0 0.0
    %949 = vmatpush1.msra.mxu0 0.0
    %950 = vmatprep.subr.mxu0 0.0
    %951 = vmatpush1.msra.mxu0 0.0
    %952 = vmatprep.subr.mxu0 0.0
    %953 = vmatpush1.msra.mxu0 0.0
    %954 = vmatprep.subr.mxu0 0.0
    %955 = vmatpush1.msra.mxu0 0.0
    %956 = vmatprep.subr.mxu0 0.0
    %957 = vmatpush1.msra.mxu0 0.0
    %958 = vmatprep.subr.mxu0 0.0
    %959 = vmatpush1.msra.mxu0 0.0
    %960 = vmatprep.subr.mxu0 0.0
    %961 = vmatpush1.msra.mxu0 0.0
    %962 = vmatprep.subr.mxu0 0.0
    %963 = vmatpush1.msra.mxu0 0.0
    %964 = vmatprep.subr.mxu0 0.0
    %965 = vmatpush1.msra.mxu0 0.0
    %966 = vmatprep.subr.mxu0 0.0
    %967 = vmatpush1.msra.mxu0 0.0
    %968 = vmatprep.mubr.f32.mxu0 0.0
    %969 = vmatmul.mubr.f32.gmra.mrb[0].mxu0 %v811
    %v970 = vpop.f32.mrb[0].mxu0
    %v971 = vadd.f32 0.0, %v970
    %v972 = vpop.f32.mrb[0].mxu0
    %v973 = vadd.f32 0.0, %v972
    %974 = vmatprep.mubr.f32.mxu0 0.0
    %975 = vmatmul.mubr.f32.gmra.mrb[0].mxu0 %v812
    %v976 = vpop.f32.mrb[0].mxu0
    %v977 = vadd.f32 0.0, %v976
    %v978 = vpop.f32.mrb[0].mxu0
    %v979 = vadd.f32 0.0, %v978
    %980 = vmatprep.mubr.f32.mxu0 0.0
    %981 = vmatmul.mubr.f32.gmra.mrb[0].mxu0 %v813
    %v982 = vpop.f32.mrb[0].mxu0
    %v983 = vadd.f32 0.0, %v982
    %v984 = vpop.f32.mrb[0].mxu0
    %v985 = vadd.f32 0.0, %v984
    %986 = vmatprep.mubr.f32.mxu0 0.0
    %987 = vmatmul.mubr.f32.gmra.mrb[0].mxu0 %v814
    %v988 = vpop.f32.mrb[0].mxu0
    %v989 = vadd.f32 0.0, %v988
    %v990 = vpop.f32.mrb[0].mxu0
    %v991 = vadd.f32 0.0, %v990
    %992 = vdwg.mxu0
    %993 = vmatprep.subr.mxu0 %v840
    %994 = vmatpush1.msra.mxu0 %v839
    %995 = vmatprep.subr.mxu0 %v842
    %996 = vmatpush1.msra.mxu0 %v841
    %997 = vmatprep.subr.mxu0 %v844
    %998 = vmatpush1.msra.mxu0 %v843
    %999 = vmatprep.subr.mxu0 %v846
    %1000 = vmatpush1.msra.mxu0 %v845
    %1001 = vmatprep.subr.mxu0 %v848
    %1002 = vmatpush1.msra.mxu0 %v847
    %1003 = vmatprep.subr.mxu0 %v850
    %1004 = vmatpush1.msra.mxu0 %v849
    %1005 = vmatprep.subr.mxu0 %v852
    %1006 = vmatpush1.msra.mxu0 %v851
    %1007 = vmatprep.subr.mxu0 %v854
    %1008 = vmatpush1.msra.mxu0 %v853
    %1009 = vmatprep.subr.mxu0 %v856
    %1010 = vmatpush1.msra.mxu0 %v855
    %1011 = vmatprep.subr.mxu0 %v858
    %1012 = vmatpush1.msra.mxu0 %v857
    %1013 = vmatprep.subr.mxu0 %v860
    %1014 = vmatpush1.msra.mxu0 %v859
    %1015 = vmatprep.subr.mxu0 %v862
    %1016 = vmatpush1.msra.mxu0 %v861
    %1017 = vmatprep.subr.mxu0 %v864
    %1018 = vmatpush1.msra.mxu0 %v863
    %1019 = vmatprep.subr.mxu0 %v866
    %1020 = vmatpush1.msra.mxu0 %v865
    %1021 = vmatprep.subr.mxu0 %v868
    %1022 = vmatpush1.msra.mxu0 %v867
    %1023 = vmatprep.subr.mxu0 %v870
    %1024 = vmatpush1.msra.mxu0 %v869
    %1025 = vmatprep.subr.mxu0 0.0
    %1026 = vmatpush1.msra.mxu0 0.0
    %1027 = vmatprep.subr.mxu0 0.0
    %1028 = vmatpush1.msra.mxu0 0.0
    %1029 = vmatprep.subr.mxu0 0.0
    %1030 = vmatpush1.msra.mxu0 0.0
    %1031 = vmatprep.subr.mxu0 0.0
    %1032 = vmatpush1.msra.mxu0 0.0
    %1033 = vmatprep.subr.mxu0 0.0
    %1034 = vmatpush1.msra.mxu0 0.0
    %1035 = vmatprep.subr.mxu0 0.0
    %1036 = vmatpush1.msra.mxu0 0.0
    %1037 = vmatprep.subr.mxu0 0.0
    %1038 = vmatpush1.msra.mxu0 0.0
    %1039 = vmatprep.subr.mxu0 0.0
    %1040 = vmatpush1.msra.mxu0 0.0
    %1041 = vmatprep.subr.mxu0 0.0
    %1042 = vmatpush1.msra.mxu0 0.0
    %1043 = vmatprep.subr.mxu0 0.0
    %1044 = vmatpush1.msra.mxu0 0.0
    %1045 = vmatprep.subr.mxu0 0.0
    %1046 = vmatpush1.msra.mxu0 0.0
    %1047 = vmatprep.subr.mxu0 0.0
    %1048 = vmatpush1.msra.mxu0 0.0
    %1049 = vmatprep.subr.mxu0 0.0
    %1050 = vmatpush1.msra.mxu0 0.0
    %1051 = vmatprep.subr.mxu0 0.0
    %1052 = vmatpush1.msra.mxu0 0.0
    %1053 = vmatprep.subr.mxu0 0.0
    %1054 = vmatpush1.msra.mxu0 0.0
    %1055 = vmatprep.subr.mxu0 0.0
    %1056 = vmatpush1.msra.mxu0 0.0
    %1057 = vmatprep.mubr.f32.mxu0 0.0
    %1058 = vmatmul.mubr.f32.gmra.mrb[0].mxu0 %v823
    %v1059 = vpop.f32.mrb[0].mxu0
    %v1060 = vadd.f32 %v971, %v1059
    %v1061 = vpop.f32.mrb[0].mxu0
    %v1062 = vadd.f32 %v973, %v1061
    %1063 = vmatprep.mubr.f32.mxu0 0.0
    %1064 = vmatmul.mubr.f32.gmra.mrb[0].mxu0 %v824
    %v1065 = vpop.f32.mrb[0].mxu0
    %v1066 = vadd.f32 %v977, %v1065
    %v1067 = vpop.f32.mrb[0].mxu0
    %v1068 = vadd.f32 %v979, %v1067
    %1069 = vmatprep.mubr.f32.mxu0 0.0
    %1070 = vmatmul.mubr.f32.gmra.mrb[0].mxu0 %v825
    %v1071 = vpop.f32.mrb[0].mxu0
    %v1072 = vadd.f32 %v983, %v1071
    %v1073 = vpop.f32.mrb[0].mxu0
    %v1074 = vadd.f32 %v985, %v1073
    %1075 = vmatprep.mubr.f32.mxu0 0.0
    %1076 = vmatmul.mubr.f32.gmra.mrb[0].mxu0 %v826
    %v1077 = vpop.f32.mrb[0].mxu0
    %v1078 = vadd.f32 %v989, %v1077
    %v1079 = vpop.f32.mrb[0].mxu0
    %v1080 = vadd.f32 %v991, %v1079
    %1081 = vdwg.mxu0
    %s1082 = scalar_lea.vmem %s8, 512
    %v1083 = vld [vmem:[%s1082] sm:$0xff]
    %v1084 = vld [vmem:[%s1082 + $0x8] sm:$0xff]
    %v1085 = vld [vmem:[%s1082 + $0x10] sm:$0xff]
    %v1086 = vld [vmem:[%s1082 + $0x18] sm:$0xff]
    %v1087 = vld [vmem:[%s1082 + $0x20] sm:$0xff]
    %v1088 = vld [vmem:[%s1082 + $0x28] sm:$0xff]
    %v1089 = vld [vmem:[%s1082 + $0x30] sm:$0xff]
    %v1090 = vld [vmem:[%s1082 + $0x38] sm:$0xff]
    %v1091 = vld [vmem:[%s1082 + $0x40] sm:$0xff]
    %v1092 = vld [vmem:[%s1082 + $0x48] sm:$0xff]
    %v1093 = vld [vmem:[%s1082 + $0x50] sm:$0xff]
    %v1094 = vld [vmem:[%s1082 + $0x58] sm:$0xff]
    %v1095 = vld [vmem:[%s1082 + $0x60] sm:$0xff]
    %v1096 = vld [vmem:[%s1082 + $0x68] sm:$0xff]
    %v1097 = vld [vmem:[%s1082 + $0x70] sm:$0xff]
    %v1098 = vld [vmem:[%s1082 + $0x78] sm:$0xff]
    %v1099 = vld [vmem:[%s1082 + $0x80] sm:$0xff]
    %v1100 = vld [vmem:[%s1082 + $0x88] sm:$0xff]
    %v1101 = vld [vmem:[%s1082 + $0x90] sm:$0xff]
    %v1102 = vld [vmem:[%s1082 + $0x98] sm:$0xff]
    %v1103 = vld [vmem:[%s1082 + $0xa0] sm:$0xff]
    %v1104 = vld [vmem:[%s1082 + $0xa8] sm:$0xff]
    %v1105 = vld [vmem:[%s1082 + $0xb0] sm:$0xff]
    %v1106 = vld [vmem:[%s1082 + $0xb8] sm:$0xff]
    %v1107 = vld [vmem:[%s1082 + $0xc0] sm:$0xff]
    %v1108 = vld [vmem:[%s1082 + $0xc8] sm:$0xff]
    %v1109 = vld [vmem:[%s1082 + $0xd0] sm:$0xff]
    %v1110 = vld [vmem:[%s1082 + $0xd8] sm:$0xff]
    %v1111 = vld [vmem:[%s1082 + $0xe0] sm:$0xff]
    %v1112 = vld [vmem:[%s1082 + $0xe8] sm:$0xff]
    %v1113 = vld [vmem:[%s1082 + $0xf0] sm:$0xff]
    %v1114 = vld [vmem:[%s1082 + $0xf8] sm:$0xff]
    %1115 = vmatprep.subr.mxu0 %v1084
    %1116 = vmatpush1.msra.mxu0 %v1083
    %1117 = vmatprep.subr.mxu0 %v1086
    %1118 = vmatpush1.msra.mxu0 %v1085
    %1119 = vmatprep.subr.mxu0 %v1088
    %1120 = vmatpush1.msra.mxu0 %v1087
    %1121 = vmatprep.subr.mxu0 %v1090
    %1122 = vmatpush1.msra.mxu0 %v1089
    %1123 = vmatprep.subr.mxu0 %v1092
    %1124 = vmatpush1.msra.mxu0 %v1091
    %1125 = vmatprep.subr.mxu0 %v1094
    %1126 = vmatpush1.msra.mxu0 %v1093
    %1127 = vmatprep.subr.mxu0 %v1096
    %1128 = vmatpush1.msra.mxu0 %v1095
    %1129 = vmatprep.subr.mxu0 %v1098
    %1130 = vmatpush1.msra.mxu0 %v1097
    %1131 = vmatprep.subr.mxu0 %v1100
    %1132 = vmatpush1.msra.mxu0 %v1099
    %1133 = vmatprep.subr.mxu0 %v1102
    %1134 = vmatpush1.msra.mxu0 %v1101
    %1135 = vmatprep.subr.mxu0 %v1104
    %1136 = vmatpush1.msra.mxu0 %v1103
    %1137 = vmatprep.subr.mxu0 %v1106
    %1138 = vmatpush1.msra.mxu0 %v1105
    %1139 = vmatprep.subr.mxu0 %v1108
    %1140 = vmatpush1.msra.mxu0 %v1107
    %1141 = vmatprep.subr.mxu0 %v1110
    %1142 = vmatpush1.msra.mxu0 %v1109
    %1143 = vmatprep.subr.mxu0 %v1112
    %1144 = vmatpush1.msra.mxu0 %v1111
    %1145 = vmatprep.subr.mxu0 %v1114
    %1146 = vmatpush1.msra.mxu0 %v1113
    %1147 = vmatprep.subr.mxu0 0.0
    %1148 = vmatpush1.msra.mxu0 0.0
    %1149 = vmatprep.subr.mxu0 0.0
    %1150 = vmatpush1.msra.mxu0 0.0
    %1151 = vmatprep.subr.mxu0 0.0
    %1152 = vmatpush1.msra.mxu0 0.0
    %1153 = vmatprep.subr.mxu0 0.0
    %1154 = vmatpush1.msra.mxu0 0.0
    %1155 = vmatprep.subr.mxu0 0.0
    %1156 = vmatpush1.msra.mxu0 0.0
    %1157 = vmatprep.subr.mxu0 0.0
    %1158 = vmatpush1.msra.mxu0 0.0
    %1159 = vmatprep.subr.mxu0 0.0
    %1160 = vmatpush1.msra.mxu0 0.0
    %1161 = vmatprep.subr.mxu0 0.0
    %1162 = vmatpush1.msra.mxu0 0.0
    %1163 = vmatprep.subr.mxu0 0.0
    %1164 = vmatpush1.msra.mxu0 0.0
    %1165 = vmatprep.subr.mxu0 0.0
    %1166 = vmatpush1.msra.mxu0 0.0
    %1167 = vmatprep.subr.mxu0 0.0
    %1168 = vmatpush1.msra.mxu0 0.0
    %1169 = vmatprep.subr.mxu0 0.0
    %1170 = vmatpush1.msra.mxu0 0.0
    %1171 = vmatprep.subr.mxu0 0.0
    %1172 = vmatpush1.msra.mxu0 0.0
    %1173 = vmatprep.subr.mxu0 0.0
    %1174 = vmatpush1.msra.mxu0 0.0
    %1175 = vmatprep.subr.mxu0 0.0
    %1176 = vmatpush1.msra.mxu0 0.0
    %1177 = vmatprep.subr.mxu0 0.0
    %1178 = vmatpush1.msra.mxu0 0.0
    %1179 = vmatprep.mubr.f32.mxu0 0.0
    %1180 = vmatmul.mubr.f32.gmra.mrb[0].mxu0 %v835
    %v1181 = vpop.f32.mrb[0].mxu0
    %v1182 = vadd.f32 0.0, %v1181
    %v1183 = vpop.f32.mrb[0].mxu0
    %v1184 = vadd.f32 0.0, %v1183
    %1185 = vmatprep.mubr.f32.mxu0 0.0
    %1186 = vmatmul.mubr.f32.gmra.mrb[0].mxu0 %v836
    %v1187 = vpop.f32.mrb[0].mxu0
    %v1188 = vadd.f32 0.0, %v1187
    %v1189 = vpop.f32.mrb[0].mxu0
    %v1190 = vadd.f32 0.0, %v1189
    %1191 = vmatprep.mubr.f32.mxu0 0.0
    %1192 = vmatmul.mubr.f32.gmra.mrb[0].mxu0 %v837
    %v1193 = vpop.f32.mrb[0].mxu0
    %v1194 = vadd.f32 0.0, %v1193
    %v1195 = vpop.f32.mrb[0].mxu0
    %v1196 = vadd.f32 0.0, %v1195
    %1197 = vmatprep.mubr.f32.mxu0 0.0
    %1198 = vmatmul.mubr.f32.gmra.mrb[0].mxu0 %v838
    %v1199 = vpop.f32.mrb[0].mxu0
    %v1200 = vadd.f32 0.0, %v1199
    %v1201 = vpop.f32.mrb[0].mxu0
    %v1202 = vadd.f32 0.0, %v1201
    %1203 = vdwg.mxu0
    %v1204 = vadd.f32 %v1060, %v1182
    %v1205 = vadd.f32 %v1062, %v1184
    %v1206 = vadd.f32 %v1066, %v1188
    %v1207 = vadd.f32 %v1068, %v1190
    %v1208 = vadd.f32 %v1072, %v1194
    %v1209 = vadd.f32 %v1074, %v1196
    %v1210 = vadd.f32 %v1078, %v1200
    %v1211 = vadd.f32 %v1080, %v1202
    %v1212 = vld [vmem:[%s9] sm:$0x3]
    %v1214 = vlaneseq
    %v1215 = vshrl.u32 %v1214, 7
    %v1216 = vsub.s32 0, %v1215
    %v1217 = vrot.slane %v1212, %v1216
    %v1218 = vlaneseq
    %v1219 = vshrl.u32 %v1218, 7
    %v1220 = vsub.s32 1, %v1219
    %v1221 = vrot.slane %v1212, %v1220
    %v1224 = vadd.f32 %v1204, %v1217
    %v1225 = vadd.f32 %v1205, %v1221
    %v1226 = vadd.f32 %v1206, %v1217
    %v1227 = vadd.f32 %v1207, %v1221
    %v1228 = vadd.f32 %v1208, %v1217
    %v1229 = vadd.f32 %v1209, %v1221
    %v1230 = vadd.f32 %v1210, %v1217
    %v1231 = vadd.f32 %v1211, %v1221
    %v1232 = vmax.f32 %v1224, 0.0
    %v1233 = vmax.f32 %v1225, 0.0
    %v1234 = vmax.f32 %v1226, 0.0
    %v1235 = vmax.f32 %v1227, 0.0
    %v1236 = vmax.f32 %v1228, 0.0
    %v1237 = vmax.f32 %v1229, 0.0
    %v1238 = vmax.f32 %v1230, 0.0
    %v1239 = vmax.f32 %v1231, 0.0
    %v1240 = vld [vmem:[%s3] sm:$0x3]
    %vm1241 = vcmask 261120
    %v1243 = vsel %vm1241, %v1240, 0
    %1245 = vmatprep.subr.mxu0 %v1233
    %1246 = vmatpush1.msra.mxu0 %v1232
    %1247 = vmatprep.subr.mxu0 %v1235
    %1248 = vmatpush1.msra.mxu0 %v1234
    %1249 = vmatprep.subr.mxu0 %v1237
    %1250 = vmatpush1.msra.mxu0 %v1236
    %1251 = vmatprep.subr.mxu0 %v1239
    %1252 = vmatpush1.msra.mxu0 %v1238
    %1253 = vmatprep.subr.mxu0 0.0
    %1254 = vmatpush1.msra.mxu0 0.0
    %1255 = vmatprep.subr.mxu0 0.0
    %1256 = vmatpush1.msra.mxu0 0.0
    %1257 = vmatprep.subr.mxu0 0.0
    %1258 = vmatpush1.msra.mxu0 0.0
    %1259 = vmatprep.subr.mxu0 0.0
    %1260 = vmatpush1.msra.mxu0 0.0
    %1261 = vmatprep.subr.mxu0 0.0
    %1262 = vmatpush1.msra.mxu0 0.0
    %1263 = vmatprep.subr.mxu0 0.0
    %1264 = vmatpush1.msra.mxu0 0.0
    %1265 = vmatprep.subr.mxu0 0.0
    %1266 = vmatpush1.msra.mxu0 0.0
    %1267 = vmatprep.subr.mxu0 0.0
    %1268 = vmatpush1.msra.mxu0 0.0
    %1269 = vmatprep.subr.mxu0 0.0
    %1270 = vmatpush1.msra.mxu0 0.0
    %1271 = vmatprep.subr.mxu0 0.0
    %1272 = vmatpush1.msra.mxu0 0.0
    %1273 = vmatprep.subr.mxu0 0.0
    %1274 = vmatpush1.msra.mxu0 0.0
    %1275 = vmatprep.subr.mxu0 0.0
    %1276 = vmatpush1.msra.mxu0 0.0
    %1277 = vmatprep.subr.mxu0 0.0
    %1278 = vmatpush1.msra.mxu0 0.0
    %1279 = vmatprep.subr.mxu0 0.0
    %1280 = vmatpush1.msra.mxu0 0.0
    %1281 = vmatprep.subr.mxu0 0.0
    %1282 = vmatpush1.msra.mxu0 0.0
    %1283 = vmatprep.subr.mxu0 0.0
    %1284 = vmatpush1.msra.mxu0 0.0
    %1285 = vmatprep.subr.mxu0 0.0
    %1286 = vmatpush1.msra.mxu0 0.0
    %1287 = vmatprep.subr.mxu0 0.0
    %1288 = vmatpush1.msra.mxu0 0.0
    %1289 = vmatprep.subr.mxu0 0.0
    %1290 = vmatpush1.msra.mxu0 0.0
    %1291 = vmatprep.subr.mxu0 0.0
    %1292 = vmatpush1.msra.mxu0 0.0
    %1293 = vmatprep.subr.mxu0 0.0
    %1294 = vmatpush1.msra.mxu0 0.0
    %1295 = vmatprep.subr.mxu0 0.0
    %1296 = vmatpush1.msra.mxu0 0.0
    %1297 = vmatprep.subr.mxu0 0.0
    %1298 = vmatpush1.msra.mxu0 0.0
    %1299 = vmatprep.subr.mxu0 0.0
    %1300 = vmatpush1.msra.mxu0 0.0
    %1301 = vmatprep.subr.mxu0 0.0
    %1302 = vmatpush1.msra.mxu0 0.0
    %1303 = vmatprep.subr.mxu0 0.0
    %1304 = vmatpush1.msra.mxu0 0.0
    %1305 = vmatprep.subr.mxu0 0.0
    %1306 = vmatpush1.msra.mxu0 0.0
    %1307 = vmatprep.subr.mxu0 0.0
    %1308 = vmatpush1.msra.mxu0 0.0
    %1309 = vmatprep.mubr.f32.mxu0 0.0
    %1310 = vmatmul.mubr.f32.gmra.mrb[0].mxu0 %v1243
    %v1311 = vpop.f32.mrb[0].mxu0
    %v1312 = vadd.f32 0.0, %v1311
    %v1313 = vpop.f32.mrb[0].mxu0
    %v1314 = vadd.f32 0.0, %v1313
    %1315 = vdwg.mxu0
    %v1316 = vld [vmem:[%s10] sm:$0xff]
    %v1317 = vld [vmem:[%s10 + $0x8] sm:$0xff]
    %v1318 = vld [vmem:[%s10 + $0x10] sm:$0xff]
    %v1319 = vld [vmem:[%s10 + $0x18] sm:$0xff]
    %v1320 = vld [vmem:[%s10 + $0x20] sm:$0xff]
    %v1321 = vld [vmem:[%s10 + $0x28] sm:$0xff]
    %v1322 = vld [vmem:[%s10 + $0x30] sm:$0xff]
    %v1323 = vld [vmem:[%s10 + $0x38] sm:$0xff]
    %v1324 = vld [vmem:[%s10 + $0x40] sm:$0xff]
    %v1325 = vld [vmem:[%s10 + $0x48] sm:$0xff]
    %v1326 = vld [vmem:[%s10 + $0x50] sm:$0xff]
    %v1327 = vld [vmem:[%s10 + $0x58] sm:$0xff]
    %v1328 = vld [vmem:[%s10 + $0x60] sm:$0xff]
    %v1329 = vld [vmem:[%s10 + $0x68] sm:$0xff]
    %v1330 = vld [vmem:[%s10 + $0x70] sm:$0xff]
    %v1331 = vld [vmem:[%s10 + $0x78] sm:$0xff]
    %v1332 = vld [vmem:[%s10 + $0x80] sm:$0xff]
    %v1333 = vld [vmem:[%s10 + $0x88] sm:$0xff]
    %v1334 = vld [vmem:[%s10 + $0x90] sm:$0xff]
    %v1335 = vld [vmem:[%s10 + $0x98] sm:$0xff]
    %v1336 = vld [vmem:[%s10 + $0xa0] sm:$0xff]
    %v1337 = vld [vmem:[%s10 + $0xa8] sm:$0xff]
    %v1338 = vld [vmem:[%s10 + $0xb0] sm:$0xff]
    %v1339 = vld [vmem:[%s10 + $0xb8] sm:$0xff]
    %v1340 = vld [vmem:[%s10 + $0xc0] sm:$0xff]
    %v1341 = vld [vmem:[%s10 + $0xc8] sm:$0xff]
    %v1342 = vld [vmem:[%s10 + $0xd0] sm:$0xff]
    %v1343 = vld [vmem:[%s10 + $0xd8] sm:$0xff]
    %v1344 = vld [vmem:[%s10 + $0xe0] sm:$0xff]
    %v1345 = vld [vmem:[%s10 + $0xe8] sm:$0xff]
    %v1346 = vld [vmem:[%s10 + $0xf0] sm:$0xff]
    %v1347 = vld [vmem:[%s10 + $0xf8] sm:$0xff]
    %v1348 = vld [vmem:[%s11] sm:$0x1]
    %v1350 = vlaneseq
    %v1351 = vshrl.u32 %v1350, 7
    %v1352 = vsub.s32 0, %v1351
    %v1353 = vrot.slane %v1348, %v1352
    %1355 = vmatprep.subr.mxu0 0.0
    %1356 = vmatpush1.msra.mxu0 %v1316
    %1357 = vmatprep.subr.mxu0 0.0
    %1358 = vmatpush1.msra.mxu0 %v1317
    %1359 = vmatprep.subr.mxu0 0.0
    %1360 = vmatpush1.msra.mxu0 %v1318
    %1361 = vmatprep.subr.mxu0 0.0
    %1362 = vmatpush1.msra.mxu0 %v1319
    %1363 = vmatprep.subr.mxu0 0.0
    %1364 = vmatpush1.msra.mxu0 %v1320
    %1365 = vmatprep.subr.mxu0 0.0
    %1366 = vmatpush1.msra.mxu0 %v1321
    %1367 = vmatprep.subr.mxu0 0.0
    %1368 = vmatpush1.msra.mxu0 %v1322
    %1369 = vmatprep.subr.mxu0 0.0
    %1370 = vmatpush1.msra.mxu0 %v1323
    %1371 = vmatprep.subr.mxu0 0.0
    %1372 = vmatpush1.msra.mxu0 %v1324
    %1373 = vmatprep.subr.mxu0 0.0
    %1374 = vmatpush1.msra.mxu0 %v1325
    %1375 = vmatprep.subr.mxu0 0.0
    %1376 = vmatpush1.msra.mxu0 %v1326
    %1377 = vmatprep.subr.mxu0 0.0
    %1378 = vmatpush1.msra.mxu0 %v1327
    %1379 = vmatprep.subr.mxu0 0.0
    %1380 = vmatpush1.msra.mxu0 %v1328
    %1381 = vmatprep.subr.mxu0 0.0
    %1382 = vmatpush1.msra.mxu0 %v1329
    %1383 = vmatprep.subr.mxu0 0.0
    %1384 = vmatpush1.msra.mxu0 %v1330
    %1385 = vmatprep.subr.mxu0 0.0
    %1386 = vmatpush1.msra.mxu0 %v1331
    %1387 = vmatprep.subr.mxu0 0.0
    %1388 = vmatpush1.msra.mxu0 %v1332
    %1389 = vmatprep.subr.mxu0 0.0
    %1390 = vmatpush1.msra.mxu0 %v1333
    %1391 = vmatprep.subr.mxu0 0.0
    %1392 = vmatpush1.msra.mxu0 %v1334
    %1393 = vmatprep.subr.mxu0 0.0
    %1394 = vmatpush1.msra.mxu0 %v1335
    %1395 = vmatprep.subr.mxu0 0.0
    %1396 = vmatpush1.msra.mxu0 %v1336
    %1397 = vmatprep.subr.mxu0 0.0
    %1398 = vmatpush1.msra.mxu0 %v1337
    %1399 = vmatprep.subr.mxu0 0.0
    %1400 = vmatpush1.msra.mxu0 %v1338
    %1401 = vmatprep.subr.mxu0 0.0
    %1402 = vmatpush1.msra.mxu0 %v1339
    %1403 = vmatprep.subr.mxu0 0.0
    %1404 = vmatpush1.msra.mxu0 %v1340
    %1405 = vmatprep.subr.mxu0 0.0
    %1406 = vmatpush1.msra.mxu0 %v1341
    %1407 = vmatprep.subr.mxu0 0.0
    %1408 = vmatpush1.msra.mxu0 %v1342
    %1409 = vmatprep.subr.mxu0 0.0
    %1410 = vmatpush1.msra.mxu0 %v1343
    %1411 = vmatprep.subr.mxu0 0.0
    %1412 = vmatpush1.msra.mxu0 %v1344
    %1413 = vmatprep.subr.mxu0 0.0
    %1414 = vmatpush1.msra.mxu0 %v1345
    %1415 = vmatprep.subr.mxu0 0.0
    %1416 = vmatpush1.msra.mxu0 %v1346
    %1417 = vmatprep.subr.mxu0 0.0
    %1418 = vmatpush1.msra.mxu0 %v1347
    %1419 = vmatprep.mubr.f32.mxu0 %v1314
    %1420 = vmatmul.mubr.f32.gmra.mrb[0].mxu0 %v1312
    %v1421 = vpop.f32.mrb[0].mxu0
    %v1422 = vadd.f32 %v1353, %v1421
    %v1423 = vpop.f32.mrb[0].mxu0
    %1424 = vdwg.mxu0
    %v1425 = vmax.f32 %v1422, 0.0
    %v1426 = vld [vmem:[%s12] sm:$0xff]
    %v1427 = vld [vmem:[%s12 + $0x8] sm:$0xff]
    %v1428 = vld [vmem:[%s12 + $0x10] sm:$0xff]
    %v1429 = vld [vmem:[%s12 + $0x18] sm:$0xff]
    %v1430 = vld [vmem:[%s12 + $0x20] sm:$0xff]
    %v1431 = vld [vmem:[%s12 + $0x28] sm:$0xff]
    %v1432 = vld [vmem:[%s12 + $0x30] sm:$0xff]
    %v1433 = vld [vmem:[%s12 + $0x38] sm:$0xff]
    %v1434 = vld [vmem:[%s12 + $0x40] sm:$0xff]
    %v1435 = vld [vmem:[%s12 + $0x48] sm:$0xff]
    %v1436 = vld [vmem:[%s12 + $0x50] sm:$0xff]
    %v1437 = vld [vmem:[%s12 + $0x58] sm:$0xff]
    %v1438 = vld [vmem:[%s12 + $0x60] sm:$0xff]
    %v1439 = vld [vmem:[%s12 + $0x68] sm:$0xff]
    %v1440 = vld [vmem:[%s12 + $0x70] sm:$0xff]
    %v1441 = vld [vmem:[%s12 + $0x78] sm:$0xff]
    %v1442 = vld [vmem:[%s13] sm:$0x1]
    %v1444 = vlaneseq
    %v1445 = vshrl.u32 %v1444, 7
    %v1446 = vsub.s32 0, %v1445
    %v1447 = vrot.slane %v1442, %v1446
    %1449 = vmatprep.subr.mxu0 0.0
    %1450 = vmatpush1.msra.mxu0 %v1426
    %1451 = vmatprep.subr.mxu0 0.0
    %1452 = vmatpush1.msra.mxu0 %v1427
    %1453 = vmatprep.subr.mxu0 0.0
    %1454 = vmatpush1.msra.mxu0 %v1428
    %1455 = vmatprep.subr.mxu0 0.0
    %1456 = vmatpush1.msra.mxu0 %v1429
    %1457 = vmatprep.subr.mxu0 0.0
    %1458 = vmatpush1.msra.mxu0 %v1430
    %1459 = vmatprep.subr.mxu0 0.0
    %1460 = vmatpush1.msra.mxu0 %v1431
    %1461 = vmatprep.subr.mxu0 0.0
    %1462 = vmatpush1.msra.mxu0 %v1432
    %1463 = vmatprep.subr.mxu0 0.0
    %1464 = vmatpush1.msra.mxu0 %v1433
    %1465 = vmatprep.subr.mxu0 0.0
    %1466 = vmatpush1.msra.mxu0 %v1434
    %1467 = vmatprep.subr.mxu0 0.0
    %1468 = vmatpush1.msra.mxu0 %v1435
    %1469 = vmatprep.subr.mxu0 0.0
    %1470 = vmatpush1.msra.mxu0 %v1436
    %1471 = vmatprep.subr.mxu0 0.0
    %1472 = vmatpush1.msra.mxu0 %v1437
    %1473 = vmatprep.subr.mxu0 0.0
    %1474 = vmatpush1.msra.mxu0 %v1438
    %1475 = vmatprep.subr.mxu0 0.0
    %1476 = vmatpush1.msra.mxu0 %v1439
    %1477 = vmatprep.subr.mxu0 0.0
    %1478 = vmatpush1.msra.mxu0 %v1440
    %1479 = vmatprep.subr.mxu0 0.0
    %1480 = vmatpush1.msra.mxu0 %v1441
    %1481 = vmatprep.subr.mxu0 0.0
    %1482 = vmatpush1.msra.mxu0 0.0
    %1483 = vmatprep.subr.mxu0 0.0
    %1484 = vmatpush1.msra.mxu0 0.0
    %1485 = vmatprep.subr.mxu0 0.0
    %1486 = vmatpush1.msra.mxu0 0.0
    %1487 = vmatprep.subr.mxu0 0.0
    %1488 = vmatpush1.msra.mxu0 0.0
    %1489 = vmatprep.subr.mxu0 0.0
    %1490 = vmatpush1.msra.mxu0 0.0
    %1491 = vmatprep.subr.mxu0 0.0
    %1492 = vmatpush1.msra.mxu0 0.0
    %1493 = vmatprep.subr.mxu0 0.0
    %1494 = vmatpush1.msra.mxu0 0.0
    %1495 = vmatprep.subr.mxu0 0.0
    %1496 = vmatpush1.msra.mxu0 0.0
    %1497 = vmatprep.subr.mxu0 0.0
    %1498 = vmatpush1.msra.mxu0 0.0
    %1499 = vmatprep.subr.mxu0 0.0
    %1500 = vmatpush1.msra.mxu0 0.0
    %1501 = vmatprep.subr.mxu0 0.0
    %1502 = vmatpush1.msra.mxu0 0.0
    %1503 = vmatprep.subr.mxu0 0.0
    %1504 = vmatpush1.msra.mxu0 0.0
    %1505 = vmatprep.subr.mxu0 0.0
    %1506 = vmatpush1.msra.mxu0 0.0
    %1507 = vmatprep.subr.mxu0 0.0
    %1508 = vmatpush1.msra.mxu0 0.0
    %1509 = vmatprep.subr.mxu0 0.0
    %1510 = vmatpush1.msra.mxu0 0.0
    %1511 = vmatprep.subr.mxu0 0.0
    %1512 = vmatpush1.msra.mxu0 0.0
    %1513 = vmatprep.mubr.f32.mxu0 0.0
    %1514 = vmatmul.mubr.f32.gmra.mrb[0].mxu0 %v1425
    %v1515 = vpop.f32.mrb[0].mxu0
    %v1516 = vadd.f32 %v1447, %v1515
    %v1517 = vpop.f32.mrb[0].mxu0
    %1518 = vdwg.mxu0
    %1519 = vst [vmem:[#allocation2] sm:$0x3] %v1516
    // Predicated region
    $region58: #{net1d_forward.1} parent=1 // pred_check
      _
    $region59: #{net1d_forward.1} parent=1 // pred_check_branch
      %1521 = sbr.rel (0) target = $region61
    $region60: #{net1d_forward.1} parent=1 // pred_region
      %s1523 = ssub.s32 32, 32
      %1524 = vsyncadd [#allocation3], %s1523
      %s1526 = sshll.u32 [#allocation2], 4
      %s1527 = int_to_ptr.vmem [resolvable:$true] %s1526
      %1529 = dma.vmem_to_hbm [thread:$0]  %s1527, 32, %s14, [#allocation3]
    $region61: #{net1d_forward.1} parent=1 // pred_fallthru
      _
    // Predicated region
    $region62: #{net1d_forward.1} parent=1 // pred_check
      _
    $region63: #{net1d_forward.1} parent=1 // pred_check_branch
      %1531 = sbr.rel (0) target = $region65
    $region64: #{net1d_forward.1} parent=1 // pred_region
      %1532 = dma.done [#allocation3], 32
    $region65: #{net1d_forward.1} parent=1 // pred_fallthru
      _
    %1533 = vsyncpa [#allocation3], 1

</llo_original>
